<compile_context>
chip_gen: v5e
topology: v5e:2x2
jax: 0.10.0
libtpu: 0.0.40
codegen_flags: <defaults>
</compile_context>

<pallas_src>
import math

import jax
import jax.numpy as jnp
from jax.experimental import pallas as pl
from jax.experimental.pallas import tpu as pltpu

BATCH = 128    # rows per call (fills MXU rows; multiple of 8 -> sublane aligned)
DIM_X = 16     # x feature dim (small synthetic size)
DIM_Z = 32     # latent dim    (scaled down from the torch default 200)
D_MODEL = 32   # hidden width  (scaled down from the torch default 200)

# ---- weight-slab row layout (W slab, 128 lanes wide) ----------------------- #
ROW_ENC1 = 0                              # rows [0, DIM_X): fused encoder 1st layer
ROW_ENC2 = ROW_ENC1 + DIM_X               # rows [., .+D_MODEL): encoder 2nd layers
ROW_DEC1 = ROW_ENC2 + D_MODEL             # rows [., .+DIM_Z): fused decoder 1st layer
ROW_DEC2 = ROW_DEC1 + DIM_Z               # rows [., .+4*D_MODEL): block-diag decoder heads
W_ROWS = ROW_DEC2 + 4 * D_MODEL           # 208
W_LANES = 128
assert all(r % 8 == 0 for r in (ROW_ENC1, ROW_ENC2, ROW_DEC1, ROW_DEC2, W_ROWS))
assert 4 * D_MODEL == 128 and 3 * D_MODEL <= 128 and 2 * DIM_Z + 2 <= 128

# lanes inside the encoder-2nd-layer row block
QZ2_LANE = 0                              # qz_w2: lanes [0, 2*DIM_Z)
QT2_LANE = 2 * DIM_Z                      # qt_w2: one lane
QY2_LANE = 2 * DIM_Z + 1                  # qy_w2: one lane
# lanes inside the decoder-head row block
PX2_LANE = 0                              # px_w2: lanes [0, 2*DIM_X)
PT2_LANE = 2 * DIM_X
PY0_LANE = 2 * DIM_X + 1
PY1_LANE = 2 * DIM_X + 2

# ---- output slab lane layout ------------------------------------------------ #
OUT_QZ = 0                                # [0, 2*DIM_Z):   q_z mu | logvar
OUT_PX = 2 * DIM_Z                        # [64, 96):       p_x mu | logvar
OUT_SC = 2 * DIM_Z + 2 * DIM_X            # [96, 102):      t_pred,y_pred,p_t,y_dec,y_t0,y_t1
OUT_W = 128
assert OUT_SC + 6 <= OUT_W


# --------------------------------------------------------------------------- #
# Kernel
# --------------------------------------------------------------------------- #
def cevae_kernel(x_ref, eps_ref, w_ref, v_ref, out_ref):
    x = x_ref[...]                                    # (B, DIM_X)
    eps = eps_ref[...]                                # (B, DIM_Z)
    dm = D_MODEL

    def mm(a, b):
        # default MXU precision, f32 accumulation
        return jnp.dot(a, b, preferred_element_type=jnp.float32)

    def sigmoid(v):
        # exact reciprocal; flip approx=True to use the EUP estimate instead
        return pl.reciprocal(1.0 + jnp.exp(-v), approx=False)

    # ------------------------- encoder ------------------------- #
    # fused first layers of q_t / q_y / q_z: one (DIM_X, 128) matmul
    h_all = mm(x, w_ref[ROW_ENC1:ROW_ENC1 + DIM_X, :]) + v_ref[0:1, :]   # (B, 128)

    # q_t
    h_t = jnp.maximum(h_all[:, 0:dm], 0.0)
    t_pred = sigmoid(
        mm(h_t, w_ref[ROW_ENC2:ROW_ENC2 + dm, QT2_LANE:QT2_LANE + 1])
        + v_ref[2:3, QT2_LANE:QT2_LANE + 1])                              # (B, 1)

    # q_y(cat([x, t]))  ==  x-part (already in h_all) + rank-1 t correction
    h_y = jnp.maximum(h_all[:, dm:2 * dm] + t_pred * v_ref[1:2, 0:dm], 0.0)
    y_pred = (mm(h_y, w_ref[ROW_ENC2:ROW_ENC2 + dm, QY2_LANE:QY2_LANE + 1])
              + v_ref[2:3, QY2_LANE:QY2_LANE + 1])                        # (B, 1)

    # q_z(cat([x, t, y]))
    h_z = jnp.maximum(h_all[:, 2 * dm:3 * dm]
                      + t_pred * v_ref[1:2, dm:2 * dm]
                      + y_pred * v_ref[1:2, 2 * dm:3 * dm], 0.0)
    qz_params = (mm(h_z, w_ref[ROW_ENC2:ROW_ENC2 + dm, QZ2_LANE:QZ2_LANE + 2 * DIM_Z])
                 + v_ref[2:3, QZ2_LANE:QZ2_LANE + 2 * DIM_Z])             # (B, 2*DIM_Z)

    # ---------------------- reparameterize ---------------------- #
    q_z_mu = qz_params[:, :DIM_Z]
    q_z_logvar = qz_params[:, DIM_Z:]
    z = q_z_mu + eps * jnp.exp(0.5 * q_z_logvar)                          # (B, DIM_Z)

    # ------------------------- decoder ------------------------- #
    # fused first layers of p_x / p_t / p_y_t0 / p_y_t1: one (DIM_Z, 128) matmul
    hid = jnp.maximum(mm(z, w_ref[ROW_DEC1:ROW_DEC1 + DIM_Z, :])
                      + v_ref[3:4, :], 0.0)                               # (B, 128)
    # fused block-diagonal second layers: one (128, 128) matmul (35 live lanes)
    dec = (mm(hid, w_ref[ROW_DEC2:ROW_DEC2 + 4 * dm, :]) + v_ref[4:5, :]) # (B, 128)

    px_params = dec[:, PX2_LANE:PX2_LANE + 2 * DIM_X]                     # (B, 2*DIM_X)
    p_t = sigmoid(dec[:, PT2_LANE:PT2_LANE + 1])
    y_t0 = dec[:, PY0_LANE:PY0_LANE + 1]
    y_t1 = dec[:, PY1_LANE:PY1_LANE + 1]
    # forward() is the t=None path, so decode mixes with its own p_t.
    y_dec = (1.0 - p_t) * y_t0 + p_t * y_t1

    # -------------------- single lane-dense output slab -------------------- #
    out_ref[:, OUT_QZ:OUT_QZ + 2 * DIM_Z] = qz_params
    out_ref[:, OUT_PX:OUT_PX + 2 * DIM_X] = px_params
    # pack the six (B, 1) scalar heads into lanes [OUT_SC, OUT_SC+6); zero the pad.
    lane = jax.lax.broadcasted_iota(jnp.int32, (1, OUT_W - OUT_SC), 1)
    sc = jnp.where(lane == 0, t_pred, 0.0)
    sc = sc + jnp.where(lane == 1, y_pred, 0.0)
    sc = sc + jnp.where(lane == 2, p_t, 0.0)
    sc = sc + jnp.where(lane == 3, y_dec, 0.0)
    sc = sc + jnp.where(lane == 4, y_t0, 0.0)
    sc = sc + jnp.where(lane == 5, y_t1, 0.0)
    out_ref[:, OUT_SC:OUT_W] = sc


# --------------------------------------------------------------------------- #
# Wrapper
# --------------------------------------------------------------------------- #
def cevae_forward(x, eps, kparams, *, batch_tiles=1):
    """Runs the fused CEVAE forward.

    batch_tiles=1 -> one grid step (best on single-TC v5e/v6e, and on v7x unless
                     each tile has >= ~256 rows).
    batch_tiles=2 -> grid over batch halves; on v7x consider CORE_PARALLEL on
                     this axis once the per-tile batch is large enough.
    """
    B = x.shape[0]
    assert B % batch_tiles == 0
    bt = B // batch_tiles
    assert bt % 8 == 0, "keep a multiple-of-8 rows per batch tile"

    w_slab = kparams["w"]
    v_slab = kparams["v"]

    in_specs = [
        pl.BlockSpec((bt, DIM_X), lambda i: (i, 0)),
        pl.BlockSpec((bt, DIM_Z), lambda i: (i, 0)),
        pl.BlockSpec(w_slab.shape, lambda i: (0, 0)),
        pl.BlockSpec(v_slab.shape, lambda i: (0, 0)),
    ]
    out_spec = pl.BlockSpec((bt, OUT_W), lambda i: (i, 0))
    out_shape = jax.ShapeDtypeStruct((B, OUT_W), jnp.float32)

    out = pl.pallas_call(
        cevae_kernel,
        out_shape=out_shape,
        grid_spec=pltpu.PrefetchScalarGridSpec(
            num_scalar_prefetch=0,
            grid=(batch_tiles,),
            in_specs=in_specs,
            out_specs=out_spec,
        ),
        compiler_params=pltpu.CompilerParams(
            dimension_semantics=("parallel",)),
    )(x, eps, w_slab, v_slab)

    return {
        "t_pred": out[:, OUT_SC + 0:OUT_SC + 1],
        "y_pred": out[:, OUT_SC + 1:OUT_SC + 2],
        "q_z_mu": out[:, OUT_QZ:OUT_QZ + DIM_Z],
        "q_z_logvar": out[:, OUT_QZ + DIM_Z:OUT_QZ + 2 * DIM_Z],
        "p_x_mu": out[:, OUT_PX:OUT_PX + DIM_X],
        "p_x_logvar": out[:, OUT_PX + DIM_X:OUT_PX + 2 * DIM_X],
        "p_t": out[:, OUT_SC + 2:OUT_SC + 3],
        "y_pred_dec": out[:, OUT_SC + 3:OUT_SC + 4],
        "y_t0": out[:, OUT_SC + 4:OUT_SC + 5],
        "y_t1": out[:, OUT_SC + 5:OUT_SC + 6],
    }


# --------------------------------------------------------------------------- #
# Parameters
# --------------------------------------------------------------------------- #
def init_raw_params(key):
    """Per-layer weights matching the PyTorch module, stored as (in, out) / (1, out)."""
    def linear(k, fan_in, fan_out):
        kw, kb = jax.random.split(k)
        bound = 1.0 / math.sqrt(fan_in)
        w = jax.random.uniform(kw, (fan_in, fan_out), jnp.float32, -bound, bound)
        b = jax.random.uniform(kb, (1, fan_out), jnp.float32, -bound, bound)
        return w, b

    keys = jax.random.split(key, 14)
    raw = {}
    raw["qt_w1"], raw["qt_b1"] = linear(keys[0], DIM_X, D_MODEL)
    raw["qt_w2"], raw["qt_b2"] = linear(keys[1], D_MODEL, 1)
    raw["qy_w1"], raw["qy_b1"] = linear(keys[2], DIM_X + 1, D_MODEL)
    raw["qy_w2"], raw["qy_b2"] = linear(keys[3], D_MODEL, 1)
    raw["qz_w1"], raw["qz_b1"] = linear(keys[4], DIM_X + 2, D_MODEL)
    raw["qz_w2"], raw["qz_b2"] = linear(keys[5], D_MODEL, 2 * DIM_Z)
    raw["px_w1"], raw["px_b1"] = linear(keys[6], DIM_Z, D_MODEL)
    raw["px_w2"], raw["px_b2"] = linear(keys[7], D_MODEL, 2 * DIM_X)
    raw["pt_w1"], raw["pt_b1"] = linear(keys[8], DIM_Z, D_MODEL)
    raw["pt_w2"], raw["pt_b2"] = linear(keys[9], D_MODEL, 1)
    raw["py0_w1"], raw["py0_b1"] = linear(keys[10], DIM_Z, D_MODEL)
    raw["py0_w2"], raw["py0_b2"] = linear(keys[11], D_MODEL, 1)
    raw["py1_w1"], raw["py1_b1"] = linear(keys[12], DIM_Z, D_MODEL)
    raw["py1_w2"], raw["py1_b2"] = linear(keys[13], D_MODEL, 1)
    return raw


def prep_kernel_params(raw):
    """Host-side weight prep: pack all 25 weights/biases into two (8,128)-tile-
    aligned slabs, fusing the encoder first layers, the decoder first layers and
    the (block-diagonal) decoder heads."""
    dm = D_MODEL

    W = jnp.zeros((W_ROWS, W_LANES), jnp.float32)
    # fused encoder first layer: [q_t | q_y x-part | q_z x-part] -> (DIM_X, 3*dm)
    W = W.at[ROW_ENC1:ROW_ENC1 + DIM_X, 0:dm].set(raw["qt_w1"])
    W = W.at[ROW_ENC1:ROW_ENC1 + DIM_X, dm:2 * dm].set(raw["qy_w1"][:DIM_X])
    W = W.at[ROW_ENC1:ROW_ENC1 + DIM_X, 2 * dm:3 * dm].set(raw["qz_w1"][:DIM_X])
    # encoder second layers share the same row block (different lanes)
    W = W.at[ROW_ENC2:ROW_ENC2 + dm, QZ2_LANE:QZ2_LANE + 2 * DIM_Z].set(raw["qz_w2"])
    W = W.at[ROW_ENC2:ROW_ENC2 + dm, QT2_LANE:QT2_LANE + 1].set(raw["qt_w2"])
    W = W.at[ROW_ENC2:ROW_ENC2 + dm, QY2_LANE:QY2_LANE + 1].set(raw["qy_w2"])
    # fused decoder first layer: [p_x | p_t | p_y_t0 | p_y_t1] -> (DIM_Z, 4*dm)
    W = W.at[ROW_DEC1:ROW_DEC1 + DIM_Z, 0:dm].set(raw["px_w1"])
    W = W.at[ROW_DEC1:ROW_DEC1 + DIM_Z, dm:2 * dm].set(raw["pt_w1"])
    W = W.at[ROW_DEC1:ROW_DEC1 + DIM_Z, 2 * dm:3 * dm].set(raw["py0_w1"])
    W = W.at[ROW_DEC1:ROW_DEC1 + DIM_Z, 3 * dm:4 * dm].set(raw["py1_w1"])
    # fused block-diagonal decoder heads: (4*dm, 2*DIM_X + 3) inside 128 lanes
    W = W.at[ROW_DEC2 + 0 * dm:ROW_DEC2 + 1 * dm,
             PX2_LANE:PX2_LANE + 2 * DIM_X].set(raw["px_w2"])
    W = W.at[ROW_DEC2 + 1 * dm:ROW_DEC2 + 2 * dm,
             PT2_LANE:PT2_LANE + 1].set(raw["pt_w2"])
    W = W.at[ROW_DEC2 + 2 * dm:ROW_DEC2 + 3 * dm,
             PY0_LANE:PY0_LANE + 1].set(raw["py0_w2"])
    W = W.at[ROW_DEC2 + 3 * dm:ROW_DEC2 + 4 * dm,
             PY1_LANE:PY1_LANE + 1].set(raw["py1_w2"])

    V = jnp.zeros((8, W_LANES), jnp.float32)
    # row 0: fused encoder first-layer biases
    V = V.at[0, 0:dm].set(raw["qt_b1"][0])
    V = V.at[0, dm:2 * dm].set(raw["qy_b1"][0])
    V = V.at[0, 2 * dm:3 * dm].set(raw["qz_b1"][0])
    # row 1: rank-1 correction rows (t column of q_y; t,y columns of q_z)
    V = V.at[1, 0:dm].set(raw["qy_w1"][DIM_X, :])
    V = V.at[1, dm:2 * dm].set(raw["qz_w1"][DIM_X, :])
    V = V.at[1, 2 * dm:3 * dm].set(raw["qz_w1"][DIM_X + 1, :])
    # row 2: encoder second-layer biases
    V = V.at[2, QZ2_LANE:QZ2_LANE + 2 * DIM_Z].set(raw["qz_b2"][0])
    V = V.at[2, QT2_LANE].set(raw["qt_b2"][0, 0])
    V = V.at[2, QY2_LANE].set(raw["qy_b2"][0, 0])
    # row 3: fused decoder first-layer biases
    V = V.at[3, 0:dm].set(raw["px_b1"][0])
    V = V.at[3, dm:2 * dm].set(raw["pt_b1"][0])
    V = V.at[3, 2 * dm:3 * dm].set(raw["py0_b1"][0])
    V = V.at[3, 3 * dm:4 * dm].set(raw["py1_b1"][0])
    # row 4: fused decoder-head biases
    V = V.at[4, PX2_LANE:PX2_LANE + 2 * DIM_X].set(raw["px_b2"][0])
    V = V.at[4, PT2_LANE].set(raw["pt_b2"][0, 0])
    V = V.at[4, PY0_LANE].set(raw["py0_b2"][0, 0])
    V = V.at[4, PY1_LANE].set(raw["py1_b2"][0, 0])

    return {"w": W, "v": V}


# --------------------------------------------------------------------------- #
# Pure-JAX reference (mirrors the PyTorch forward; uses the raw per-layer
# weights so it also validates the host-side slab packing).  cat([x, t], 1) @ W
# == x @ W[:dx] + t * W[dx:dx+1] exactly as an affine map; the split form is
# used so the reference shares the kernel's numerical grouping.
# --------------------------------------------------------------------------- #
def reference_forward(x, eps, raw):
    relu = lambda v: jnp.maximum(v, 0.0)
    sig = lambda v: 1.0 / (1.0 + jnp.exp(-v))

    # q_t
    h = relu(x @ raw["qt_w1"] + raw["qt_b1"])
    t_pred = sig(h @ raw["qt_w2"] + raw["qt_b2"])
    # q_y(cat([x, t]))
    h = relu(x @ raw["qy_w1"][:DIM_X] + t_pred * raw["qy_w1"][DIM_X:DIM_X + 1]
             + raw["qy_b1"])
    y_pred = h @ raw["qy_w2"] + raw["qy_b2"]
    # q_z(cat([x, t, y]))
    h = relu(x @ raw["qz_w1"][:DIM_X] + t_pred * raw["qz_w1"][DIM_X:DIM_X + 1]
             + y_pred * raw["qz_w1"][DIM_X + 1:DIM_X + 2] + raw["qz_b1"])
    qz_params = h @ raw["qz_w2"] + raw["qz_b2"]
    q_z_mu, q_z_logvar = qz_params[:, :DIM_Z], qz_params[:, DIM_Z:]
    z = q_z_mu + eps * jnp.exp(0.5 * q_z_logvar)

    def mlp(inp, w1, b1, w2, b2):
        return relu(inp @ w1 + b1) @ w2 + b2

    px_params = mlp(z, raw["px_w1"], raw["px_b1"], raw["px_w2"], raw["px_b2"])
    p_x_mu, p_x_logvar = px_params[:, :DIM_X], px_params[:, DIM_X:]
    p_t = sig(mlp(z, raw["pt_w1"], raw["pt_b1"], raw["pt_w2"], raw["pt_b2"]))
    y_t0 = mlp(z, raw["py0_w1"], raw["py0_b1"], raw["py0_w2"], raw["py0_b2"])
    y_t1 = mlp(z, raw["py1_w1"], raw["py1_b1"], raw["py1_w2"], raw["py1_b2"])
    y_dec = (1.0 - p_t) * y_t0 + p_t * y_t1

    return {
        "t_pred": t_pred, "y_pred": y_pred,
        "q_z_mu": q_z_mu, "q_z_logvar": q_z_logvar,
        "p_x_mu": p_x_mu, "p_x_logvar": p_x_logvar,
        "p_t": p_t, "y_pred_dec": y_dec, "y_t0": y_t0, "y_t1": y_t1,
    }


# --------------------------------------------------------------------------- #
if __name__ == "__main__":
    key = jax.random.PRNGKey(0)
    kx, keps, kp = jax.random.split(key, 3)
    x = jax.random.normal(kx, (BATCH, DIM_X), jnp.float32)
    eps = jax.random.normal(keps, (BATCH, DIM_Z), jnp.float32)

    raw = init_raw_params(kp)
    kparams = prep_kernel_params(raw)

    out = cevae_forward(x, eps, kparams)
    out = jax.block_until_ready(out)

    ref = reference_forward(x, eps, raw)
    expected_shapes = {
        "t_pred": (BATCH, 1), "y_pred": (BATCH, 1),
        "q_z_mu": (BATCH, DIM_Z), "q_z_logvar": (BATCH, DIM_Z),
        "p_x_mu": (BATCH, DIM_X), "p_x_logvar": (BATCH, DIM_X),
        "p_t": (BATCH, 1), "y_pred_dec": (BATCH, 1),
        "y_t0": (BATCH, 1), "y_t1": (BATCH, 1),
    }
    for name, shape in expected_shapes.items():
        assert out[name].shape == shape, (name, out[name].shape, shape)
        # default-precision MXU passes on both sides -> tight agreement expected
        assert jnp.allclose(out[name], ref[name], atol=3e-3, rtol=3e-3), (
            name, out[name], ref[name])
    print("KERNEL_OK")
</pallas_src>

<mosaic_0001>
module attributes {stable_mosaic.version = 11 : i64} {
  func.func @cevae_kernel(%arg0: i32, %arg1: memref<128x16xf32, #tpu.memory_space<vmem>>, %arg2: memref<128x32xf32, #tpu.memory_space<vmem>>, %arg3: memref<208x128xf32, #tpu.memory_space<vmem>>, %arg4: memref<8x128xf32, #tpu.memory_space<vmem>>, %arg5: memref<128x128xf32, #tpu.memory_space<vmem>>) attributes {dimension_semantics = [#tpu.dimension_semantics<parallel>], iteration_bounds = array<i64: 1>, scalar_prefetch = 0 : i64, scratch_operands = 0 : i64, tpu.core_type = #tpu.core_type<tc>, window_params = [{transform_indices = @transform_0, window_bounds = array<i64: 128, 16>}, {transform_indices = @transform_1, window_bounds = array<i64: 128, 32>}, {pipeline_mode = #tpu.pipeline_mode<synchronous>, transform_indices = @transform_2, window_bounds = array<i64: 208, 128>}, {pipeline_mode = #tpu.pipeline_mode<synchronous>, transform_indices = @transform_3, window_bounds = array<i64: 8, 128>}, {transform_indices = @transform_4, window_bounds = array<i64: 128, 128>}]} {
    %c0 = arith.constant 0 : index
    %c0_0 = arith.constant 0 : index
    %0 = vector.load %arg1[%c0, %c0_0] : memref<128x16xf32, #tpu.memory_space<vmem>>, vector<128x16xf32>
    %c0_1 = arith.constant 0 : index
    %c0_2 = arith.constant 0 : index
    %1 = vector.load %arg2[%c0_1, %c0_2] : memref<128x32xf32, #tpu.memory_space<vmem>>, vector<128x32xf32>
    %c0_3 = arith.constant 0 : index
    %c0_4 = arith.constant 0 : index
    %2 = vector.load %arg3[%c0_3, %c0_4] : memref<208x128xf32, #tpu.memory_space<vmem>>, vector<16x128xf32>
    %cst = arith.constant dense<0.000000e+00> : vector<128x128xf32>
    %3 = tpu.matmul %0, %2, %cst {dimension_numbers = #tpu.dot_dimension_numbers<[1], [0], [0], [1], [0, 0, 1, 1], [], []>} : vector<128x16xf32>, vector<16x128xf32>, vector<128x128xf32> -> vector<128x128xf32>
    %c0_5 = arith.constant 0 : index
    %c0_6 = arith.constant 0 : index
    %4 = vector.load %arg4[%c0_5, %c0_6] : memref<8x128xf32, #tpu.memory_space<vmem>>, vector<1x128xf32>
    %5 = vector.broadcast %4 : vector<1x128xf32> to vector<128x128xf32>
    %6 = arith.addf %3, %5 : vector<128x128xf32>
    %7 = vector.extract_strided_slice %6 {offsets = [0, 0], sizes = [128, 32], strides = [1, 1]} : vector<128x128xf32> to vector<128x32xf32>
    %cst_7 = arith.constant 0.000000e+00 : f32
    %8 = vector.broadcast %cst_7 : f32 to vector<128x32xf32>
    %9 = arith.maximumf %7, %8 : vector<128x32xf32>
    %c16 = arith.constant 16 : index
    %c64 = arith.constant 64 : index
    %10 = vector.load %arg3[%c16, %c64] : memref<208x128xf32, #tpu.memory_space<vmem>>, vector<32x1xf32>
    %cst_8 = arith.constant dense<0.000000e+00> : vector<128x1xf32>
    %11 = tpu.matmul %9, %10, %cst_8 {dimension_numbers = #tpu.dot_dimension_numbers<[1], [0], [0], [1], [0, 0, 1, 1], [], []>} : vector<128x32xf32>, vector<32x1xf32>, vector<128x1xf32> -> vector<128x1xf32>
    %c2 = arith.constant 2 : index
    %c64_9 = arith.constant 64 : index
    %12 = vector.load %arg4[%c2, %c64_9] : memref<8x128xf32, #tpu.memory_space<vmem>>, vector<1x1xf32>
    %13 = vector.broadcast %12 : vector<1x1xf32> to vector<128x1xf32>
    %14 = arith.addf %11, %13 : vector<128x1xf32>
    %cst_10 = arith.constant 0.000000e+00 : f32
    %15 = vector.broadcast %cst_10 : f32 to vector<128x1xf32>
    %16 = arith.subf %15, %14 : vector<128x1xf32>
    %17 = math.exp %16 : vector<128x1xf32>
    %cst_11 = arith.constant 1.000000e+00 : f32
    %18 = vector.broadcast %cst_11 : f32 to vector<128x1xf32>
    %19 = arith.addf %18, %17 : vector<128x1xf32>
    %20 = tpu.reciprocal %19 : vector<128x1xf32> -> vector<128x1xf32>
    %21 = vector.extract_strided_slice %6 {offsets = [0, 32], sizes = [128, 32], strides = [1, 1]} : vector<128x128xf32> to vector<128x32xf32>
    %c1 = arith.constant 1 : index
    %c0_12 = arith.constant 0 : index
    %22 = vector.load %arg4[%c1, %c0_12] : memref<8x128xf32, #tpu.memory_space<vmem>>, vector<1x32xf32>
    %23 = vector.broadcast %20 : vector<128x1xf32> to vector<128x32xf32>
    %24 = vector.broadcast %22 : vector<1x32xf32> to vector<128x32xf32>
    %25 = arith.mulf %23, %24 : vector<128x32xf32>
    %26 = arith.addf %21, %25 : vector<128x32xf32>
    %cst_13 = arith.constant 0.000000e+00 : f32
    %27 = vector.broadcast %cst_13 : f32 to vector<128x32xf32>
    %28 = arith.maximumf %26, %27 : vector<128x32xf32>
    %c16_14 = arith.constant 16 : index
    %c65 = arith.constant 65 : index
    %29 = vector.load %arg3[%c16_14, %c65] : memref<208x128xf32, #tpu.memory_space<vmem>>, vector<32x1xf32>
    %cst_15 = arith.constant dense<0.000000e+00> : vector<128x1xf32>
    %30 = tpu.matmul %28, %29, %cst_15 {dimension_numbers = #tpu.dot_dimension_numbers<[1], [0], [0], [1], [0, 0, 1, 1], [], []>} : vector<128x32xf32>, vector<32x1xf32>, vector<128x1xf32> -> vector<128x1xf32>
    %c2_16 = arith.constant 2 : index
    %c65_17 = arith.constant 65 : index
    %31 = vector.load %arg4[%c2_16, %c65_17] : memref<8x128xf32, #tpu.memory_space<vmem>>, vector<1x1xf32>
    %32 = vector.broadcast %31 : vector<1x1xf32> to vector<128x1xf32>
    %33 = arith.addf %30, %32 : vector<128x1xf32>
    %34 = vector.extract_strided_slice %6 {offsets = [0, 64], sizes = [128, 32], strides = [1, 1]} : vector<128x128xf32> to vector<128x32xf32>
    %c1_18 = arith.constant 1 : index
    %c32 = arith.constant 32 : index
    %35 = vector.load %arg4[%c1_18, %c32] : memref<8x128xf32, #tpu.memory_space<vmem>>, vector<1x32xf32>
    %36 = vector.broadcast %20 : vector<128x1xf32> to vector<128x32xf32>
    %37 = vector.broadcast %35 : vector<1x32xf32> to vector<128x32xf32>
    %38 = arith.mulf %36, %37 : vector<128x32xf32>
    %39 = arith.addf %34, %38 : vector<128x32xf32>
    %c1_19 = arith.constant 1 : index
    %c64_20 = arith.constant 64 : index
    %40 = vector.load %arg4[%c1_19, %c64_20] : memref<8x128xf32, #tpu.memory_space<vmem>>, vector<1x32xf32>
    %41 = vector.broadcast %33 : vector<128x1xf32> to vector<128x32xf32>
    %42 = vector.broadcast %40 : vector<1x32xf32> to vector<128x32xf32>
    %43 = arith.mulf %41, %42 : vector<128x32xf32>
    %44 = arith.addf %39, %43 : vector<128x32xf32>
    %cst_21 = arith.constant 0.000000e+00 : f32
    %45 = vector.broadcast %cst_21 : f32 to vector<128x32xf32>
    %46 = arith.maximumf %44, %45 : vector<128x32xf32>
    %c16_22 = arith.constant 16 : index
    %c0_23 = arith.constant 0 : index
    %47 = vector.load %arg3[%c16_22, %c0_23] : memref<208x128xf32, #tpu.memory_space<vmem>>, vector<32x64xf32>
    %cst_24 = arith.constant dense<0.000000e+00> : vector<128x64xf32>
    %48 = tpu.matmul %46, %47, %cst_24 {dimension_numbers = #tpu.dot_dimension_numbers<[1], [0], [0], [1], [0, 0, 1, 1], [], []>} : vector<128x32xf32>, vector<32x64xf32>, vector<128x64xf32> -> vector<128x64xf32>
    %c2_25 = arith.constant 2 : index
    %c0_26 = arith.constant 0 : index
    %49 = vector.load %arg4[%c2_25, %c0_26] : memref<8x128xf32, #tpu.memory_space<vmem>>, vector<1x64xf32>
    %50 = vector.broadcast %49 : vector<1x64xf32> to vector<128x64xf32>
    %51 = arith.addf %48, %50 : vector<128x64xf32>
    %52 = vector.extract_strided_slice %51 {offsets = [0, 0], sizes = [128, 32], strides = [1, 1]} : vector<128x64xf32> to vector<128x32xf32>
    %53 = vector.extract_strided_slice %51 {offsets = [0, 32], sizes = [128, 32], strides = [1, 1]} : vector<128x64xf32> to vector<128x32xf32>
    %cst_27 = arith.constant 5.000000e-01 : f32
    %54 = vector.broadcast %cst_27 : f32 to vector<128x32xf32>
    %55 = arith.mulf %54, %53 : vector<128x32xf32>
    %56 = math.exp %55 : vector<128x32xf32>
    %57 = arith.mulf %1, %56 : vector<128x32xf32>
    %58 = arith.addf %52, %57 : vector<128x32xf32>
    %c48 = arith.constant 48 : index
    %c0_28 = arith.constant 0 : index
    %59 = vector.load %arg3[%c48, %c0_28] : memref<208x128xf32, #tpu.memory_space<vmem>>, vector<32x128xf32>
    %cst_29 = arith.constant dense<0.000000e+00> : vector<128x128xf32>
    %60 = tpu.matmul %58, %59, %cst_29 {dimension_numbers = #tpu.dot_dimension_numbers<[1], [0], [0], [1], [0, 0, 1, 1], [], []>} : vector<128x32xf32>, vector<32x128xf32>, vector<128x128xf32> -> vector<128x128xf32>
    %c3 = arith.constant 3 : index
    %c0_30 = arith.constant 0 : index
    %61 = vector.load %arg4[%c3, %c0_30] : memref<8x128xf32, #tpu.memory_space<vmem>>, vector<1x128xf32>
    %62 = vector.broadcast %61 : vector<1x128xf32> to vector<128x128xf32>
    %63 = arith.addf %60, %62 : vector<128x128xf32>
    %cst_31 = arith.constant 0.000000e+00 : f32
    %64 = vector.broadcast %cst_31 : f32 to vector<128x128xf32>
    %65 = arith.maximumf %63, %64 : vector<128x128xf32>
    %c80 = arith.constant 80 : index
    %c0_32 = arith.constant 0 : index
    %66 = vector.load %arg3[%c80, %c0_32] : memref<208x128xf32, #tpu.memory_space<vmem>>, vector<128x128xf32>
    %cst_33 = arith.constant dense<0.000000e+00> : vector<128x128xf32>
    %67 = tpu.matmul %65, %66, %cst_33 {dimension_numbers = #tpu.dot_dimension_numbers<[1], [0], [0], [1], [0, 0, 1, 1], [], []>} : vector<128x128xf32>, vector<128x128xf32>, vector<128x128xf32> -> vector<128x128xf32>
    %c4 = arith.constant 4 : index
    %c0_34 = arith.constant 0 : index
    %68 = vector.load %arg4[%c4, %c0_34] : memref<8x128xf32, #tpu.memory_space<vmem>>, vector<1x128xf32>
    %69 = vector.broadcast %68 : vector<1x128xf32> to vector<128x128xf32>
    %70 = arith.addf %67, %69 : vector<128x128xf32>
    %71 = vector.extract_strided_slice %70 {offsets = [0, 0], sizes = [128, 32], strides = [1, 1]} : vector<128x128xf32> to vector<128x32xf32>
    %72 = vector.extract_strided_slice %70 {offsets = [0, 32], sizes = [128, 1], strides = [1, 1]} : vector<128x128xf32> to vector<128x1xf32>
    %cst_35 = arith.constant 0.000000e+00 : f32
    %73 = vector.broadcast %cst_35 : f32 to vector<128x1xf32>
    %74 = arith.subf %73, %72 : vector<128x1xf32>
    %75 = math.exp %74 : vector<128x1xf32>
    %cst_36 = arith.constant 1.000000e+00 : f32
    %76 = vector.broadcast %cst_36 : f32 to vector<128x1xf32>
    %77 = arith.addf %76, %75 : vector<128x1xf32>
    %78 = tpu.reciprocal %77 : vector<128x1xf32> -> vector<128x1xf32>
    %79 = vector.extract_strided_slice %70 {offsets = [0, 33], sizes = [128, 1], strides = [1, 1]} : vector<128x128xf32> to vector<128x1xf32>
    %80 = vector.extract_strided_slice %70 {offsets = [0, 34], sizes = [128, 1], strides = [1, 1]} : vector<128x128xf32> to vector<128x1xf32>
    %cst_37 = arith.constant 1.000000e+00 : f32
    %81 = vector.broadcast %cst_37 : f32 to vector<128x1xf32>
    %82 = arith.subf %81, %78 : vector<128x1xf32>
    %83 = arith.mulf %82, %79 : vector<128x1xf32>
    %84 = arith.mulf %78, %80 : vector<128x1xf32>
    %85 = arith.addf %83, %84 : vector<128x1xf32>
    %c0_38 = arith.constant 0 : index
    %c0_39 = arith.constant 0 : index
    %86 = vector.load %arg5[%c0_38, %c0_39] : memref<128x128xf32, #tpu.memory_space<vmem>>, vector<128x64xf32>
    tpu.vector_store %arg5[%c0_38, %c0_39], %51 {strides = array<i32>} : memref<128x128xf32, #tpu.memory_space<vmem>>, vector<128x64xf32>,
    %c0_40 = arith.constant 0 : index
    %c64_41 = arith.constant 64 : index
    %87 = vector.load %arg5[%c0_40, %c64_41] : memref<128x128xf32, #tpu.memory_space<vmem>>, vector<128x32xf32>
    tpu.vector_store %arg5[%c0_40, %c64_41], %71 {strides = array<i32>} : memref<128x128xf32, #tpu.memory_space<vmem>>, vector<128x32xf32>,
    %88 = tpu.iota {dimensions = array<i32: 1>} : vector<1x32xi32>
    %c0_i32 = arith.constant 0 : i32
    %89 = vector.broadcast %c0_i32 : i32 to vector<1x32xi32>
    %90 = arith.cmpi eq, %88, %89 : vector<1x32xi32>
    %cst_42 = arith.constant 0.000000e+00 : f32
    %91 = vector.shape_cast %90 : vector<1x32xi1> to vector<1x32xi1>
    %92 = vector.broadcast %91 : vector<1x32xi1> to vector<128x32xi1>
    %93 = vector.shape_cast %20 : vector<128x1xf32> to vector<128x1xf32>
    %94 = vector.broadcast %93 : vector<128x1xf32> to vector<128x32xf32>
    %95 = vector.broadcast %cst_42 : f32 to vector<128x32xf32>
    %96 = arith.select %92, %94, %95 : vector<128x32xi1>, vector<128x32xf32>
    %c1_i32 = arith.constant 1 : i32
    %97 = vector.broadcast %c1_i32 : i32 to vector<1x32xi32>
    %98 = arith.cmpi eq, %88, %97 : vector<1x32xi32>
    %cst_43 = arith.constant 0.000000e+00 : f32
    %99 = vector.shape_cast %98 : vector<1x32xi1> to vector<1x32xi1>
    %100 = vector.broadcast %99 : vector<1x32xi1> to vector<128x32xi1>
    %101 = vector.shape_cast %33 : vector<128x1xf32> to vector<128x1xf32>
    %102 = vector.broadcast %101 : vector<128x1xf32> to vector<128x32xf32>
    %103 = vector.broadcast %cst_43 : f32 to vector<128x32xf32>
    %104 = arith.select %100, %102, %103 : vector<128x32xi1>, vector<128x32xf32>
    %105 = arith.addf %96, %104 : vector<128x32xf32>
    %c2_i32 = arith.constant 2 : i32
    %106 = vector.broadcast %c2_i32 : i32 to vector<1x32xi32>
    %107 = arith.cmpi eq, %88, %106 : vector<1x32xi32>
    %cst_44 = arith.constant 0.000000e+00 : f32
    %108 = vector.shape_cast %107 : vector<1x32xi1> to vector<1x32xi1>
    %109 = vector.broadcast %108 : vector<1x32xi1> to vector<128x32xi1>
    %110 = vector.shape_cast %78 : vector<128x1xf32> to vector<128x1xf32>
    %111 = vector.broadcast %110 : vector<128x1xf32> to vector<128x32xf32>
    %112 = vector.broadcast %cst_44 : f32 to vector<128x32xf32>
    %113 = arith.select %109, %111, %112 : vector<128x32xi1>, vector<128x32xf32>
    %114 = arith.addf %105, %113 : vector<128x32xf32>
    %c3_i32 = arith.constant 3 : i32
    %115 = vector.broadcast %c3_i32 : i32 to vector<1x32xi32>
    %116 = arith.cmpi eq, %88, %115 : vector<1x32xi32>
    %cst_45 = arith.constant 0.000000e+00 : f32
    %117 = vector.shape_cast %116 : vector<1x32xi1> to vector<1x32xi1>
    %118 = vector.broadcast %117 : vector<1x32xi1> to vector<128x32xi1>
    %119 = vector.shape_cast %85 : vector<128x1xf32> to vector<128x1xf32>
    %120 = vector.broadcast %119 : vector<128x1xf32> to vector<128x32xf32>
    %121 = vector.broadcast %cst_45 : f32 to vector<128x32xf32>
    %122 = arith.select %118, %120, %121 : vector<128x32xi1>, vector<128x32xf32>
    %123 = arith.addf %114, %122 : vector<128x32xf32>
    %c4_i32 = arith.constant 4 : i32
    %124 = vector.broadcast %c4_i32 : i32 to vector<1x32xi32>
    %125 = arith.cmpi eq, %88, %124 : vector<1x32xi32>
    %cst_46 = arith.constant 0.000000e+00 : f32
    %126 = vector.shape_cast %125 : vector<1x32xi1> to vector<1x32xi1>
    %127 = vector.broadcast %126 : vector<1x32xi1> to vector<128x32xi1>
    %128 = vector.shape_cast %79 : vector<128x1xf32> to vector<128x1xf32>
    %129 = vector.broadcast %128 : vector<128x1xf32> to vector<128x32xf32>
    %130 = vector.broadcast %cst_46 : f32 to vector<128x32xf32>
    %131 = arith.select %127, %129, %130 : vector<128x32xi1>, vector<128x32xf32>
    %132 = arith.addf %123, %131 : vector<128x32xf32>
    %c5_i32 = arith.constant 5 : i32
    %133 = vector.broadcast %c5_i32 : i32 to vector<1x32xi32>
    %134 = arith.cmpi eq, %88, %133 : vector<1x32xi32>
    %cst_47 = arith.constant 0.000000e+00 : f32
    %135 = vector.shape_cast %134 : vector<1x32xi1> to vector<1x32xi1>
    %136 = vector.broadcast %135 : vector<1x32xi1> to vector<128x32xi1>
    %137 = vector.shape_cast %80 : vector<128x1xf32> to vector<128x1xf32>
    %138 = vector.broadcast %137 : vector<128x1xf32> to vector<128x32xf32>
    %139 = vector.broadcast %cst_47 : f32 to vector<128x32xf32>
    %140 = arith.select %136, %138, %139 : vector<128x32xi1>, vector<128x32xf32>
    %141 = arith.addf %132, %140 : vector<128x32xf32>
    %c0_48 = arith.constant 0 : index
    %c96 = arith.constant 96 : index
    %142 = vector.load %arg5[%c0_48, %c96] : memref<128x128xf32, #tpu.memory_space<vmem>>, vector<128x32xf32>
    tpu.vector_store %arg5[%c0_48, %c96], %141 {strides = array<i32>} : memref<128x128xf32, #tpu.memory_space<vmem>>, vector<128x32xf32>,
    return
  }
  func.func @transform_0(%arg0: i32) -> (i32, i32) {
    %c0_i32 = arith.constant 0 : i32
    %c0_i32_0 = arith.constant 0 : i32
    return %arg0, %c0_i32 : i32, i32
  }
  func.func @transform_1(%arg0: i32) -> (i32, i32) {
    %c0_i32 = arith.constant 0 : i32
    %c0_i32_0 = arith.constant 0 : i32
    return %arg0, %c0_i32 : i32, i32
  }
  func.func @transform_2(%arg0: i32) -> (i32, i32) {
    %c0_i32 = arith.constant 0 : i32
    %c0_i32_0 = arith.constant 0 : i32
    %c0_i32_1 = arith.constant 0 : i32
    return %c0_i32, %c0_i32_0 : i32, i32
  }
  func.func @transform_3(%arg0: i32) -> (i32, i32) {
    %c0_i32 = arith.constant 0 : i32
    %c0_i32_0 = arith.constant 0 : i32
    %c0_i32_1 = arith.constant 0 : i32
    return %c0_i32, %c0_i32_0 : i32, i32
  }
  func.func @transform_4(%arg0: i32) -> (i32, i32) {
    %c0_i32 = arith.constant 0 : i32
    %c0_i32_0 = arith.constant 0 : i32
    return %arg0, %c0_i32 : i32, i32
  }
}

</mosaic_0001>

<llo_original>
// kernel: tpu_custom_call.1
$region0: #{tpu_custom_call.1}
  #allocation0 [shape = 'u32[]', space=smem, size = 0x4, offset = 0x4, fixed_abs, tag = 'smem constant byte address 0x4 - core index']
  #allocation1 [shape = 'u32[72,128]{1,0:T(1,128)}', space=vmem, size = 0x9000, scoped, tag = 'internal scratch']
  %s0 = inlined_call_operand.vmem [shape: f32[128,16], index: 0, kind: input, shape index: {}]
  %s1 = inlined_call_operand.vmem [shape: f32[128,32], index: 1, kind: input, shape index: {}]
  %s2 = inlined_call_operand.vmem [shape: f32[208,128], index: 2, kind: input, shape index: {}]
  %s3 = inlined_call_operand.vmem [shape: f32[8,128], index: 3, kind: input, shape index: {}]
  %s4 = inlined_call_operand.hbm [shape: f32[128,128], index: 4, kind: output, shape index: {}]
  %s5 = sld [smem:[#allocation0]]
  $region26: #{tpu_custom_call.1} parent=0
    _
  %s7 = ssub.s32 1, %s5
  %s8 = scalar_select 0, %s7, %s5
  $region1: #{tpu_custom_call.1} parent=0
    #allocation2 [shape = 'u8[65536]{0}', space=vmem, size = 0x10000, scoped, tag = 'output window, operand 0, single buffered']
    #allocation3 [shape = 's32[1]{0}', space=sflag, size = 0x4, scoped, tag = 'scoped memory for tpu_custom_call.1']
    %9 = vsyncpa [#allocation3], 0
    // Predicated region
    $region2: #{tpu_custom_call.1} parent=1 // pred_check
      _
    $region3: #{tpu_custom_call.1} parent=1 // pred_check_branch
      %11 = sbr.rel (0) target = $region5
    $region4: #{tpu_custom_call.1} parent=1 // pred_region
      _
    $region5: #{tpu_custom_call.1} parent=1 // pred_fallthru
      _
    // Predicated region
    $region6: #{tpu_custom_call.1} parent=1 // pred_check
      _
    $region7: #{tpu_custom_call.1} parent=1 // pred_check_branch
      %13 = sbr.rel (0) target = $region9
    $region8: #{tpu_custom_call.1} parent=1 // pred_region
      _
    $region9: #{tpu_custom_call.1} parent=1 // pred_fallthru
      _
    // Predicated region
    $region10: #{tpu_custom_call.1} parent=1 // pred_check
      _
    $region11: #{tpu_custom_call.1} parent=1 // pred_check_branch
      %15 = sbr.rel (0) target = $region13
    $region12: #{tpu_custom_call.1} parent=1 // pred_region
      _
    $region13: #{tpu_custom_call.1} parent=1 // pred_fallthru
      _
    // Predicated region
    $region14: #{tpu_custom_call.1} parent=1 // pred_check
      _
    $region15: #{tpu_custom_call.1} parent=1 // pred_check_branch
      %17 = sbr.rel (0) target = $region17
    $region16: #{tpu_custom_call.1} parent=1 // pred_region
      _
    $region17: #{tpu_custom_call.1} parent=1 // pred_fallthru
      _
    %v18 = vld [vmem:[%s0] sm:$0xff]
    %v19 = vld [vmem:[%s0 + $0x8] sm:$0xff]
    %v20 = vld [vmem:[%s0 + $0x10] sm:$0xff]
    %v21 = vld [vmem:[%s0 + $0x18] sm:$0xff]
    %v22 = vld [vmem:[%s0 + $0x20] sm:$0xff]
    %v23 = vld [vmem:[%s0 + $0x28] sm:$0xff]
    %v24 = vld [vmem:[%s0 + $0x30] sm:$0xff]
    %v25 = vld [vmem:[%s0 + $0x38] sm:$0xff]
    %v26 = vld [vmem:[%s0 + $0x40] sm:$0xff]
    %v27 = vld [vmem:[%s0 + $0x48] sm:$0xff]
    %v28 = vld [vmem:[%s0 + $0x50] sm:$0xff]
    %v29 = vld [vmem:[%s0 + $0x58] sm:$0xff]
    %v30 = vld [vmem:[%s0 + $0x60] sm:$0xff]
    %v31 = vld [vmem:[%s0 + $0x68] sm:$0xff]
    %v32 = vld [vmem:[%s0 + $0x70] sm:$0xff]
    %v33 = vld [vmem:[%s0 + $0x78] sm:$0xff]
    %v34 = vld [vmem:[%s1] sm:$0xff]
    %v35 = vld [vmem:[%s1 + $0x8] sm:$0xff]
    %v36 = vld [vmem:[%s1 + $0x10] sm:$0xff]
    %v37 = vld [vmem:[%s1 + $0x18] sm:$0xff]
    %v38 = vld [vmem:[%s1 + $0x20] sm:$0xff]
    %v39 = vld [vmem:[%s1 + $0x28] sm:$0xff]
    %v40 = vld [vmem:[%s1 + $0x30] sm:$0xff]
    %v41 = vld [vmem:[%s1 + $0x38] sm:$0xff]
    %v42 = vld [vmem:[%s1 + $0x40] sm:$0xff]
    %v43 = vld [vmem:[%s1 + $0x48] sm:$0xff]
    %v44 = vld [vmem:[%s1 + $0x50] sm:$0xff]
    %v45 = vld [vmem:[%s1 + $0x58] sm:$0xff]
    %v46 = vld [vmem:[%s1 + $0x60] sm:$0xff]
    %v47 = vld [vmem:[%s1 + $0x68] sm:$0xff]
    %v48 = vld [vmem:[%s1 + $0x70] sm:$0xff]
    %v49 = vld [vmem:[%s1 + $0x78] sm:$0xff]
    %v50 = vld [vmem:[%s2] sm:$0xff]
    %v51 = vld [vmem:[%s2 + $0x8] sm:$0xff]
    %v52 = vld [vmem:[%s3] sm:$0x1]
    %v53 = vperm.slane %v52, 0
    %vm54 = vcmask 130048
    %v56 = vsel %vm54, %v18, 0
    %v59 = vsel %vm54, %v19, 0
    %v62 = vsel %vm54, %v20, 0
    %v65 = vsel %vm54, %v21, 0
    %v68 = vsel %vm54, %v22, 0
    %v71 = vsel %vm54, %v23, 0
    %v74 = vsel %vm54, %v24, 0
    %v77 = vsel %vm54, %v25, 0
    %v80 = vsel %vm54, %v26, 0
    %v83 = vsel %vm54, %v27, 0
    %v86 = vsel %vm54, %v28, 0
    %v89 = vsel %vm54, %v29, 0
    %v92 = vsel %vm54, %v30, 0
    %v95 = vsel %vm54, %v31, 0
    %v98 = vsel %vm54, %v32, 0
    %v101 = vsel %vm54, %v33, 0
    %103 = vmatpush.msra.mxu0 0.0
    %104 = vmatpush.msra.mxu0 0.0
    %105 = vmatpush.msra.mxu0 0.0
    %106 = vmatpush.msra.mxu0 0.0
    %107 = vmatpush.msra.mxu0 0.0
    %108 = vmatpush.msra.mxu0 0.0
    %109 = vmatpush.msra.mxu0 0.0
    %110 = vmatpush.msra.mxu0 0.0
    %111 = vmatpush.msra.mxu0 0.0
    %112 = vmatpush.msra.mxu0 0.0
    %113 = vmatpush.msra.mxu0 0.0
    %114 = vmatpush.msra.mxu0 0.0
    %115 = vmatpush.msra.mxu0 0.0
    %116 = vmatpush.msra.mxu0 0.0
    %117 = vmatpush.msra.mxu0 %v51
    %118 = vmatpush.msra.mxu0 %v50
    %119 = vmatmul.f32.gmra.mxu0 %v56
    %v120 = vpop.f32.mrf.mxu0
    %v121 = vadd.f32 %v53, %v120
    %122 = vmatmul.f32.gmra.mxu0 %v59
    %v123 = vpop.f32.mrf.mxu0
    %v124 = vadd.f32 %v53, %v123
    %125 = vmatmul.f32.gmra.mxu0 %v62
    %v126 = vpop.f32.mrf.mxu0
    %v127 = vadd.f32 %v53, %v126
    %128 = vmatmul.f32.gmra.mxu0 %v65
    %v129 = vpop.f32.mrf.mxu0
    %v130 = vadd.f32 %v53, %v129
    %131 = vmatmul.f32.gmra.mxu0 %v68
    %v132 = vpop.f32.mrf.mxu0
    %v133 = vadd.f32 %v53, %v132
    %134 = vmatmul.f32.gmra.mxu0 %v71
    %v135 = vpop.f32.mrf.mxu0
    %v136 = vadd.f32 %v53, %v135
    %137 = vmatmul.f32.gmra.mxu0 %v74
    %v138 = vpop.f32.mrf.mxu0
    %v139 = vadd.f32 %v53, %v138
    %140 = vmatmul.f32.gmra.mxu0 %v77
    %v141 = vpop.f32.mrf.mxu0
    %v142 = vadd.f32 %v53, %v141
    %143 = vmatmul.f32.gmra.mxu0 %v80
    %v144 = vpop.f32.mrf.mxu0
    %v145 = vadd.f32 %v53, %v144
    %146 = vmatmul.f32.gmra.mxu0 %v83
    %v147 = vpop.f32.mrf.mxu0
    %v148 = vadd.f32 %v53, %v147
    %149 = vmatmul.f32.gmra.mxu0 %v86
    %v150 = vpop.f32.mrf.mxu0
    %v151 = vadd.f32 %v53, %v150
    %152 = vmatmul.f32.gmra.mxu0 %v89
    %v153 = vpop.f32.mrf.mxu0
    %v154 = vadd.f32 %v53, %v153
    %155 = vmatmul.f32.gmra.mxu0 %v92
    %v156 = vpop.f32.mrf.mxu0
    %v157 = vadd.f32 %v53, %v156
    %158 = vmatmul.f32.gmra.mxu0 %v95
    %v159 = vpop.f32.mrf.mxu0
    %v160 = vadd.f32 %v53, %v159
    %161 = vmatmul.f32.gmra.mxu0 %v98
    %v162 = vpop.f32.mrf.mxu0
    %v163 = vadd.f32 %v53, %v162
    %164 = vmatmul.f32.gmra.mxu0 %v101
    %v165 = vpop.f32.mrf.mxu0
    %v166 = vadd.f32 %v53, %v165
    %167 = vdwg.mxu0
    %v168 = vmax.f32 %v121, 0.0
    %v169 = vmax.f32 %v124, 0.0
    %v170 = vmax.f32 %v127, 0.0
    %v171 = vmax.f32 %v130, 0.0
    %v172 = vmax.f32 %v133, 0.0
    %v173 = vmax.f32 %v136, 0.0
    %v174 = vmax.f32 %v139, 0.0
    %v175 = vmax.f32 %v142, 0.0
    %v176 = vmax.f32 %v145, 0.0
    %v177 = vmax.f32 %v148, 0.0
    %v178 = vmax.f32 %v151, 0.0
    %v179 = vmax.f32 %v154, 0.0
    %v180 = vmax.f32 %v157, 0.0
    %v181 = vmax.f32 %v160, 0.0
    %v182 = vmax.f32 %v163, 0.0
    %v183 = vmax.f32 %v166, 0.0
    %v184 = vld [vmem:[%s2 + $0x10] sm:$0xff]
    %v185 = vld [vmem:[%s2 + $0x18] sm:$0xff]
    %v186 = vld [vmem:[%s2 + $0x20] sm:$0xff]
    %v187 = vld [vmem:[%s2 + $0x28] sm:$0xff]
    %v188 = vld [vmem:[%s3 + $0x2] sm:$0x1]
    %v189 = vperm.slane %v188, 0
    %194 = vrot.lane.b32.xlu0 %v184, 64
    %v195 = vpop.permute.xlu0 %194
    %196 = vrot.lane.b32.xlu0 %v185, 64
    %v197 = vpop.permute.xlu0 %196
    %198 = vrot.lane.b32.xlu0 %v186, 64
    %v199 = vpop.permute.xlu0 %198
    %200 = vrot.lane.b32.xlu0 %v187, 64
    %v201 = vpop.permute.xlu0 %200
    %207 = vrot.lane.b32.xlu0 %v189, 64
    %v208 = vpop.permute.xlu0 %207
    %vm210 = vcmask 261120
    %v212 = vsel %vm210, %v168, 0
    %v215 = vsel %vm210, %v169, 0
    %v218 = vsel %vm210, %v170, 0
    %v221 = vsel %vm210, %v171, 0
    %v224 = vsel %vm210, %v172, 0
    %v227 = vsel %vm210, %v173, 0
    %v230 = vsel %vm210, %v174, 0
    %v233 = vsel %vm210, %v175, 0
    %v236 = vsel %vm210, %v176, 0
    %v239 = vsel %vm210, %v177, 0
    %v242 = vsel %vm210, %v178, 0
    %v245 = vsel %vm210, %v179, 0
    %v248 = vsel %vm210, %v180, 0
    %v251 = vsel %vm210, %v181, 0
    %v254 = vsel %vm210, %v182, 0
    %v257 = vsel %vm210, %v183, 0
    %259 = vmatpush.msra.mxu0 0.0
    %260 = vmatpush.msra.mxu0 0.0
    %261 = vmatpush.msra.mxu0 0.0
    %262 = vmatpush.msra.mxu0 0.0
    %263 = vmatpush.msra.mxu0 0.0
    %264 = vmatpush.msra.mxu0 0.0
    %265 = vmatpush.msra.mxu0 0.0
    %266 = vmatpush.msra.mxu0 0.0
    %267 = vmatpush.msra.mxu0 0.0
    %268 = vmatpush.msra.mxu0 0.0
    %269 = vmatpush.msra.mxu0 0.0
    %270 = vmatpush.msra.mxu0 0.0
    %271 = vmatpush.msra.mxu0 %v201
    %272 = vmatpush.msra.mxu0 %v199
    %273 = vmatpush.msra.mxu0 %v197
    %274 = vmatpush.msra.mxu0 %v195
    %275 = vmatmul.f32.gmra.mxu0 %v212
    %v276 = vpop.f32.mrf.mxu0
    %v277 = vadd.f32 %v208, %v276
    %278 = vmatmul.f32.gmra.mxu0 %v215
    %v279 = vpop.f32.mrf.mxu0
    %v280 = vadd.f32 %v208, %v279
    %281 = vmatmul.f32.gmra.mxu0 %v218
    %v282 = vpop.f32.mrf.mxu0
    %v283 = vadd.f32 %v208, %v282
    %284 = vmatmul.f32.gmra.mxu0 %v221
    %v285 = vpop.f32.mrf.mxu0
    %v286 = vadd.f32 %v208, %v285
    %287 = vmatmul.f32.gmra.mxu0 %v224
    %v288 = vpop.f32.mrf.mxu0
    %v289 = vadd.f32 %v208, %v288
    %290 = vmatmul.f32.gmra.mxu0 %v227
    %v291 = vpop.f32.mrf.mxu0
    %v292 = vadd.f32 %v208, %v291
    %293 = vmatmul.f32.gmra.mxu0 %v230
    %v294 = vpop.f32.mrf.mxu0
    %v295 = vadd.f32 %v208, %v294
    %296 = vmatmul.f32.gmra.mxu0 %v233
    %v297 = vpop.f32.mrf.mxu0
    %v298 = vadd.f32 %v208, %v297
    %299 = vmatmul.f32.gmra.mxu0 %v236
    %v300 = vpop.f32.mrf.mxu0
    %v301 = vadd.f32 %v208, %v300
    %302 = vmatmul.f32.gmra.mxu0 %v239
    %v303 = vpop.f32.mrf.mxu0
    %v304 = vadd.f32 %v208, %v303
    %305 = vmatmul.f32.gmra.mxu0 %v242
    %v306 = vpop.f32.mrf.mxu0
    %v307 = vadd.f32 %v208, %v306
    %308 = vmatmul.f32.gmra.mxu0 %v245
    %v309 = vpop.f32.mrf.mxu0
    %v310 = vadd.f32 %v208, %v309
    %311 = vmatmul.f32.gmra.mxu0 %v248
    %v312 = vpop.f32.mrf.mxu0
    %v313 = vadd.f32 %v208, %v312
    %314 = vmatmul.f32.gmra.mxu0 %v251
    %v315 = vpop.f32.mrf.mxu0
    %v316 = vadd.f32 %v208, %v315
    %317 = vmatmul.f32.gmra.mxu0 %v254
    %v318 = vpop.f32.mrf.mxu0
    %v319 = vadd.f32 %v208, %v318
    %320 = vmatmul.f32.gmra.mxu0 %v257
    %v321 = vpop.f32.mrf.mxu0
    %v322 = vadd.f32 %v208, %v321
    %323 = vdwg.mxu0
    %v324 = vsub.f32 0.0, %v277
    %v325 = vsub.f32 0.0, %v280
    %v326 = vsub.f32 0.0, %v283
    %v327 = vsub.f32 0.0, %v286
    %v328 = vsub.f32 0.0, %v289
    %v329 = vsub.f32 0.0, %v292
    %v330 = vsub.f32 0.0, %v295
    %v331 = vsub.f32 0.0, %v298
    %v332 = vsub.f32 0.0, %v301
    %v333 = vsub.f32 0.0, %v304
    %v334 = vsub.f32 0.0, %v307
    %v335 = vsub.f32 0.0, %v310
    %v336 = vsub.f32 0.0, %v313
    %v337 = vsub.f32 0.0, %v316
    %v338 = vsub.f32 0.0, %v319
    %v339 = vsub.f32 0.0, %v322
    %v340 = vmul.f32 %v324, 1.442695
    %v341 = vpow.pop %v340
    %v342 = vmul.f32 %v325, 1.442695
    %v343 = vpow.pop %v342
    %v344 = vmul.f32 %v326, 1.442695
    %v345 = vpow.pop %v344
    %v346 = vmul.f32 %v327, 1.442695
    %v347 = vpow.pop %v346
    %v348 = vmul.f32 %v328, 1.442695
    %v349 = vpow.pop %v348
    %v350 = vmul.f32 %v329, 1.442695
    %v351 = vpow.pop %v350
    %v352 = vmul.f32 %v330, 1.442695
    %v353 = vpow.pop %v352
    %v354 = vmul.f32 %v331, 1.442695
    %v355 = vpow.pop %v354
    %v356 = vmul.f32 %v332, 1.442695
    %v357 = vpow.pop %v356
    %v358 = vmul.f32 %v333, 1.442695
    %v359 = vpow.pop %v358
    %v360 = vmul.f32 %v334, 1.442695
    %v361 = vpow.pop %v360
    %v362 = vmul.f32 %v335, 1.442695
    %v363 = vpow.pop %v362
    %v364 = vmul.f32 %v336, 1.442695
    %v365 = vpow.pop %v364
    %v366 = vmul.f32 %v337, 1.442695
    %v367 = vpow.pop %v366
    %v368 = vmul.f32 %v338, 1.442695
    %v369 = vpow.pop %v368
    %v370 = vmul.f32 %v339, 1.442695
    %v371 = vpow.pop %v370
    %v372 = vadd.f32 %v341, 1.0
    %v373 = vadd.f32 %v343, 1.0
    %v374 = vadd.f32 %v345, 1.0
    %v375 = vadd.f32 %v347, 1.0
    %v376 = vadd.f32 %v349, 1.0
    %v377 = vadd.f32 %v351, 1.0
    %v378 = vadd.f32 %v353, 1.0
    %v379 = vadd.f32 %v355, 1.0
    %v380 = vadd.f32 %v357, 1.0
    %v381 = vadd.f32 %v359, 1.0
    %v382 = vadd.f32 %v361, 1.0
    %v383 = vadd.f32 %v363, 1.0
    %v384 = vadd.f32 %v365, 1.0
    %v385 = vadd.f32 %v367, 1.0
    %v386 = vadd.f32 %v369, 1.0
    %v387 = vadd.f32 %v371, 1.0
    %v388 = vrcp.pop %v372
    %v389 = vmul.f32 %v372, %v388
    %v390 = vsub.f32 1.0, %v389
    %v391 = vmul.f32 %v388, %v390
    %v392 = vadd.f32 %v388, %v391
    %vm393 = vweird.f32 %v372
    %vm394 = vweird.f32 %v388
    %vm395 = vmor %vm393, %vm394
    %v396 = vsel %vm395, %v388, %v392
    %v397 = vand.u32 2147483647, %v372
    %vm398 = vcmp.eq.f32.partialorder %v397, 8.507059e+37
    %v399 = vand.u32 %v372, 2147483648
    %v400 = vor.u32 1.1754944e-38, %v399
    %v401 = vsel %vm398, %v400, %v396
    %v402 = vrcp.pop %v373
    %v403 = vmul.f32 %v373, %v402
    %v404 = vsub.f32 1.0, %v403
    %v405 = vmul.f32 %v402, %v404
    %v406 = vadd.f32 %v402, %v405
    %vm407 = vweird.f32 %v373
    %vm408 = vweird.f32 %v402
    %vm409 = vmor %vm407, %vm408
    %v410 = vsel %vm409, %v402, %v406
    %v411 = vand.u32 2147483647, %v373
    %vm412 = vcmp.eq.f32.partialorder %v411, 8.507059e+37
    %v413 = vand.u32 %v373, 2147483648
    %v414 = vor.u32 1.1754944e-38, %v413
    %v415 = vsel %vm412, %v414, %v410
    %v416 = vrcp.pop %v374
    %v417 = vmul.f32 %v374, %v416
    %v418 = vsub.f32 1.0, %v417
    %v419 = vmul.f32 %v416, %v418
    %v420 = vadd.f32 %v416, %v419
    %vm421 = vweird.f32 %v374
    %vm422 = vweird.f32 %v416
    %vm423 = vmor %vm421, %vm422
    %v424 = vsel %vm423, %v416, %v420
    %v425 = vand.u32 2147483647, %v374
    %vm426 = vcmp.eq.f32.partialorder %v425, 8.507059e+37
    %v427 = vand.u32 %v374, 2147483648
    %v428 = vor.u32 1.1754944e-38, %v427
    %v429 = vsel %vm426, %v428, %v424
    %v430 = vrcp.pop %v375
    %v431 = vmul.f32 %v375, %v430
    %v432 = vsub.f32 1.0, %v431
    %v433 = vmul.f32 %v430, %v432
    %v434 = vadd.f32 %v430, %v433
    %vm435 = vweird.f32 %v375
    %vm436 = vweird.f32 %v430
    %vm437 = vmor %vm435, %vm436
    %v438 = vsel %vm437, %v430, %v434
    %v439 = vand.u32 2147483647, %v375
    %vm440 = vcmp.eq.f32.partialorder %v439, 8.507059e+37
    %v441 = vand.u32 %v375, 2147483648
    %v442 = vor.u32 1.1754944e-38, %v441
    %v443 = vsel %vm440, %v442, %v438
    %v444 = vrcp.pop %v376
    %v445 = vmul.f32 %v376, %v444
    %v446 = vsub.f32 1.0, %v445
    %v447 = vmul.f32 %v444, %v446
    %v448 = vadd.f32 %v444, %v447
    %vm449 = vweird.f32 %v376
    %vm450 = vweird.f32 %v444
    %vm451 = vmor %vm449, %vm450
    %v452 = vsel %vm451, %v444, %v448
    %v453 = vand.u32 2147483647, %v376
    %vm454 = vcmp.eq.f32.partialorder %v453, 8.507059e+37
    %v455 = vand.u32 %v376, 2147483648
    %v456 = vor.u32 1.1754944e-38, %v455
    %v457 = vsel %vm454, %v456, %v452
    %v458 = vrcp.pop %v377
    %v459 = vmul.f32 %v377, %v458
    %v460 = vsub.f32 1.0, %v459
    %v461 = vmul.f32 %v458, %v460
    %v462 = vadd.f32 %v458, %v461
    %vm463 = vweird.f32 %v377
    %vm464 = vweird.f32 %v458
    %vm465 = vmor %vm463, %vm464
    %v466 = vsel %vm465, %v458, %v462
    %v467 = vand.u32 2147483647, %v377
    %vm468 = vcmp.eq.f32.partialorder %v467, 8.507059e+37
    %v469 = vand.u32 %v377, 2147483648
    %v470 = vor.u32 1.1754944e-38, %v469
    %v471 = vsel %vm468, %v470, %v466
    %v472 = vrcp.pop %v378
    %v473 = vmul.f32 %v378, %v472
    %v474 = vsub.f32 1.0, %v473
    %v475 = vmul.f32 %v472, %v474
    %v476 = vadd.f32 %v472, %v475
    %vm477 = vweird.f32 %v378
    %vm478 = vweird.f32 %v472
    %vm479 = vmor %vm477, %vm478
    %v480 = vsel %vm479, %v472, %v476
    %v481 = vand.u32 2147483647, %v378
    %vm482 = vcmp.eq.f32.partialorder %v481, 8.507059e+37
    %v483 = vand.u32 %v378, 2147483648
    %v484 = vor.u32 1.1754944e-38, %v483
    %v485 = vsel %vm482, %v484, %v480
    %v486 = vrcp.pop %v379
    %v487 = vmul.f32 %v379, %v486
    %v488 = vsub.f32 1.0, %v487
    %v489 = vmul.f32 %v486, %v488
    %v490 = vadd.f32 %v486, %v489
    %vm491 = vweird.f32 %v379
    %vm492 = vweird.f32 %v486
    %vm493 = vmor %vm491, %vm492
    %v494 = vsel %vm493, %v486, %v490
    %v495 = vand.u32 2147483647, %v379
    %vm496 = vcmp.eq.f32.partialorder %v495, 8.507059e+37
    %v497 = vand.u32 %v379, 2147483648
    %v498 = vor.u32 1.1754944e-38, %v497
    %v499 = vsel %vm496, %v498, %v494
    %v500 = vrcp.pop %v380
    %v501 = vmul.f32 %v380, %v500
    %v502 = vsub.f32 1.0, %v501
    %v503 = vmul.f32 %v500, %v502
    %v504 = vadd.f32 %v500, %v503
    %vm505 = vweird.f32 %v380
    %vm506 = vweird.f32 %v500
    %vm507 = vmor %vm505, %vm506
    %v508 = vsel %vm507, %v500, %v504
    %v509 = vand.u32 2147483647, %v380
    %vm510 = vcmp.eq.f32.partialorder %v509, 8.507059e+37
    %v511 = vand.u32 %v380, 2147483648
    %v512 = vor.u32 1.1754944e-38, %v511
    %v513 = vsel %vm510, %v512, %v508
    %v514 = vrcp.pop %v381
    %v515 = vmul.f32 %v381, %v514
    %v516 = vsub.f32 1.0, %v515
    %v517 = vmul.f32 %v514, %v516
    %v518 = vadd.f32 %v514, %v517
    %vm519 = vweird.f32 %v381
    %vm520 = vweird.f32 %v514
    %vm521 = vmor %vm519, %vm520
    %v522 = vsel %vm521, %v514, %v518
    %v523 = vand.u32 2147483647, %v381
    %vm524 = vcmp.eq.f32.partialorder %v523, 8.507059e+37
    %v525 = vand.u32 %v381, 2147483648
    %v526 = vor.u32 1.1754944e-38, %v525
    %v527 = vsel %vm524, %v526, %v522
    %v528 = vrcp.pop %v382
    %v529 = vmul.f32 %v382, %v528
    %v530 = vsub.f32 1.0, %v529
    %v531 = vmul.f32 %v528, %v530
    %v532 = vadd.f32 %v528, %v531
    %vm533 = vweird.f32 %v382
    %vm534 = vweird.f32 %v528
    %vm535 = vmor %vm533, %vm534
    %v536 = vsel %vm535, %v528, %v532
    %v537 = vand.u32 2147483647, %v382
    %vm538 = vcmp.eq.f32.partialorder %v537, 8.507059e+37
    %v539 = vand.u32 %v382, 2147483648
    %v540 = vor.u32 1.1754944e-38, %v539
    %v541 = vsel %vm538, %v540, %v536
    %v542 = vrcp.pop %v383
    %v543 = vmul.f32 %v383, %v542
    %v544 = vsub.f32 1.0, %v543
    %v545 = vmul.f32 %v542, %v544
    %v546 = vadd.f32 %v542, %v545
    %vm547 = vweird.f32 %v383
    %vm548 = vweird.f32 %v542
    %vm549 = vmor %vm547, %vm548
    %v550 = vsel %vm549, %v542, %v546
    %v551 = vand.u32 2147483647, %v383
    %vm552 = vcmp.eq.f32.partialorder %v551, 8.507059e+37
    %v553 = vand.u32 %v383, 2147483648
    %v554 = vor.u32 1.1754944e-38, %v553
    %v555 = vsel %vm552, %v554, %v550
    %v556 = vrcp.pop %v384
    %v557 = vmul.f32 %v384, %v556
    %v558 = vsub.f32 1.0, %v557
    %v559 = vmul.f32 %v556, %v558
    %v560 = vadd.f32 %v556, %v559
    %vm561 = vweird.f32 %v384
    %vm562 = vweird.f32 %v556
    %vm563 = vmor %vm561, %vm562
    %v564 = vsel %vm563, %v556, %v560
    %v565 = vand.u32 2147483647, %v384
    %vm566 = vcmp.eq.f32.partialorder %v565, 8.507059e+37
    %v567 = vand.u32 %v384, 2147483648
    %v568 = vor.u32 1.1754944e-38, %v567
    %v569 = vsel %vm566, %v568, %v564
    %v570 = vrcp.pop %v385
    %v571 = vmul.f32 %v385, %v570
    %v572 = vsub.f32 1.0, %v571
    %v573 = vmul.f32 %v570, %v572
    %v574 = vadd.f32 %v570, %v573
    %vm575 = vweird.f32 %v385
    %vm576 = vweird.f32 %v570
    %vm577 = vmor %vm575, %vm576
    %v578 = vsel %vm577, %v570, %v574
    %v579 = vand.u32 2147483647, %v385
    %vm580 = vcmp.eq.f32.partialorder %v579, 8.507059e+37
    %v581 = vand.u32 %v385, 2147483648
    %v582 = vor.u32 1.1754944e-38, %v581
    %v583 = vsel %vm580, %v582, %v578
    %v584 = vrcp.pop %v386
    %v585 = vmul.f32 %v386, %v584
    %v586 = vsub.f32 1.0, %v585
    %v587 = vmul.f32 %v584, %v586
    %v588 = vadd.f32 %v584, %v587
    %vm589 = vweird.f32 %v386
    %vm590 = vweird.f32 %v584
    %vm591 = vmor %vm589, %vm590
    %v592 = vsel %vm591, %v584, %v588
    %v593 = vand.u32 2147483647, %v386
    %vm594 = vcmp.eq.f32.partialorder %v593, 8.507059e+37
    %v595 = vand.u32 %v386, 2147483648
    %v596 = vor.u32 1.1754944e-38, %v595
    %v597 = vsel %vm594, %v596, %v592
    %v598 = vrcp.pop %v387
    %v599 = vmul.f32 %v387, %v598
    %v600 = vsub.f32 1.0, %v599
    %v601 = vmul.f32 %v598, %v600
    %v602 = vadd.f32 %v598, %v601
    %vm603 = vweird.f32 %v387
    %vm604 = vweird.f32 %v598
    %vm605 = vmor %vm603, %vm604
    %v606 = vsel %vm605, %v598, %v602
    %v607 = vand.u32 2147483647, %v387
    %vm608 = vcmp.eq.f32.partialorder %v607, 8.507059e+37
    %v609 = vand.u32 %v387, 2147483648
    %v610 = vor.u32 1.1754944e-38, %v609
    %v611 = vsel %vm608, %v610, %v606
    %v612 = vld [vmem:[%s3 + $0x1] sm:$0x1]
    %614 = vset.pattern.permute.xlu0 0
    %615 = vperm.xlu0 %614, %v401
    %v616 = vpop.permute.xlu0 %615
    %619 = vset.pattern.permute.xlu0 0
    %620 = vperm.xlu0 %619, %v415
    %v621 = vpop.permute.xlu0 %620
    %624 = vset.pattern.permute.xlu0 0
    %625 = vperm.xlu0 %624, %v429
    %v626 = vpop.permute.xlu0 %625
    %629 = vset.pattern.permute.xlu0 0
    %630 = vperm.xlu0 %629, %v443
    %v631 = vpop.permute.xlu0 %630
    %634 = vset.pattern.permute.xlu0 0
    %635 = vperm.xlu0 %634, %v457
    %v636 = vpop.permute.xlu0 %635
    %639 = vset.pattern.permute.xlu0 0
    %640 = vperm.xlu0 %639, %v471
    %v641 = vpop.permute.xlu0 %640
    %644 = vset.pattern.permute.xlu0 0
    %645 = vperm.xlu0 %644, %v485
    %v646 = vpop.permute.xlu0 %645
    %649 = vset.pattern.permute.xlu0 0
    %650 = vperm.xlu0 %649, %v499
    %v651 = vpop.permute.xlu0 %650
    %654 = vset.pattern.permute.xlu0 0
    %655 = vperm.xlu0 %654, %v513
    %v656 = vpop.permute.xlu0 %655
    %659 = vset.pattern.permute.xlu0 0
    %660 = vperm.xlu0 %659, %v527
    %v661 = vpop.permute.xlu0 %660
    %664 = vset.pattern.permute.xlu0 0
    %665 = vperm.xlu0 %664, %v541
    %v666 = vpop.permute.xlu0 %665
    %669 = vset.pattern.permute.xlu0 0
    %670 = vperm.xlu0 %669, %v555
    %v671 = vpop.permute.xlu0 %670
    %674 = vset.pattern.permute.xlu0 0
    %675 = vperm.xlu0 %674, %v569
    %v676 = vpop.permute.xlu0 %675
    %679 = vset.pattern.permute.xlu0 0
    %680 = vperm.xlu0 %679, %v583
    %v681 = vpop.permute.xlu0 %680
    %684 = vset.pattern.permute.xlu0 0
    %685 = vperm.xlu0 %684, %v597
    %v686 = vpop.permute.xlu0 %685
    %689 = vset.pattern.permute.xlu0 0
    %690 = vperm.xlu0 %689, %v611
    %v691 = vpop.permute.xlu0 %690
    %v693 = vperm.slane %v612, 0
    %v694 = vmul.f32 %v616, %v693
    %v695 = vmul.f32 %v621, %v693
    %v696 = vmul.f32 %v626, %v693
    %v697 = vmul.f32 %v631, %v693
    %v698 = vmul.f32 %v636, %v693
    %v699 = vmul.f32 %v641, %v693
    %v700 = vmul.f32 %v646, %v693
    %v701 = vmul.f32 %v651, %v693
    %v702 = vmul.f32 %v656, %v693
    %v703 = vmul.f32 %v661, %v693
    %v704 = vmul.f32 %v666, %v693
    %v705 = vmul.f32 %v671, %v693
    %v706 = vmul.f32 %v676, %v693
    %v707 = vmul.f32 %v681, %v693
    %v708 = vmul.f32 %v686, %v693
    %v709 = vmul.f32 %v691, %v693
    %726 = vrot.lane.b32.xlu0 %v694, 32
    %v727 = vpop.permute.xlu0 %726
    %728 = vrot.lane.b32.xlu0 %v695, 32
    %v729 = vpop.permute.xlu0 %728
    %730 = vrot.lane.b32.xlu0 %v696, 32
    %v731 = vpop.permute.xlu0 %730
    %732 = vrot.lane.b32.xlu0 %v697, 32
    %v733 = vpop.permute.xlu0 %732
    %734 = vrot.lane.b32.xlu0 %v698, 32
    %v735 = vpop.permute.xlu0 %734
    %736 = vrot.lane.b32.xlu0 %v699, 32
    %v737 = vpop.permute.xlu0 %736
    %738 = vrot.lane.b32.xlu0 %v700, 32
    %v739 = vpop.permute.xlu0 %738
    %740 = vrot.lane.b32.xlu0 %v701, 32
    %v741 = vpop.permute.xlu0 %740
    %742 = vrot.lane.b32.xlu0 %v702, 32
    %v743 = vpop.permute.xlu0 %742
    %744 = vrot.lane.b32.xlu0 %v703, 32
    %v745 = vpop.permute.xlu0 %744
    %746 = vrot.lane.b32.xlu0 %v704, 32
    %v747 = vpop.permute.xlu0 %746
    %748 = vrot.lane.b32.xlu0 %v705, 32
    %v749 = vpop.permute.xlu0 %748
    %750 = vrot.lane.b32.xlu0 %v706, 32
    %v751 = vpop.permute.xlu0 %750
    %752 = vrot.lane.b32.xlu0 %v707, 32
    %v753 = vpop.permute.xlu0 %752
    %754 = vrot.lane.b32.xlu0 %v708, 32
    %v755 = vpop.permute.xlu0 %754
    %756 = vrot.lane.b32.xlu0 %v709, 32
    %v757 = vpop.permute.xlu0 %756
    %v774 = vadd.f32 %v121, %v727
    %v775 = vadd.f32 %v124, %v729
    %v776 = vadd.f32 %v127, %v731
    %v777 = vadd.f32 %v130, %v733
    %v778 = vadd.f32 %v133, %v735
    %v779 = vadd.f32 %v136, %v737
    %v780 = vadd.f32 %v139, %v739
    %v781 = vadd.f32 %v142, %v741
    %v782 = vadd.f32 %v145, %v743
    %v783 = vadd.f32 %v148, %v745
    %v784 = vadd.f32 %v151, %v747
    %v785 = vadd.f32 %v154, %v749
    %v786 = vadd.f32 %v157, %v751
    %v787 = vadd.f32 %v160, %v753
    %v788 = vadd.f32 %v163, %v755
    %v789 = vadd.f32 %v166, %v757
    %v790 = vmax.f32 %v774, 0.0
    %v791 = vmax.f32 %v775, 0.0
    %v792 = vmax.f32 %v776, 0.0
    %v793 = vmax.f32 %v777, 0.0
    %v794 = vmax.f32 %v778, 0.0
    %v795 = vmax.f32 %v779, 0.0
    %v796 = vmax.f32 %v780, 0.0
    %v797 = vmax.f32 %v781, 0.0
    %v798 = vmax.f32 %v782, 0.0
    %v799 = vmax.f32 %v783, 0.0
    %v800 = vmax.f32 %v784, 0.0
    %v801 = vmax.f32 %v785, 0.0
    %v802 = vmax.f32 %v786, 0.0
    %v803 = vmax.f32 %v787, 0.0
    %v804 = vmax.f32 %v788, 0.0
    %v805 = vmax.f32 %v789, 0.0
    %822 = vrot.lane.b32.xlu0 %v790, 96
    %v823 = vpop.permute.xlu0 %822
    %824 = vrot.lane.b32.xlu0 %v791, 96
    %v825 = vpop.permute.xlu0 %824
    %826 = vrot.lane.b32.xlu0 %v792, 96
    %v827 = vpop.permute.xlu0 %826
    %828 = vrot.lane.b32.xlu0 %v793, 96
    %v829 = vpop.permute.xlu0 %828
    %830 = vrot.lane.b32.xlu0 %v794, 96
    %v831 = vpop.permute.xlu0 %830
    %832 = vrot.lane.b32.xlu0 %v795, 96
    %v833 = vpop.permute.xlu0 %832
    %834 = vrot.lane.b32.xlu0 %v796, 96
    %v835 = vpop.permute.xlu0 %834
    %836 = vrot.lane.b32.xlu0 %v797, 96
    %v837 = vpop.permute.xlu0 %836
    %838 = vrot.lane.b32.xlu0 %v798, 96
    %v839 = vpop.permute.xlu0 %838
    %840 = vrot.lane.b32.xlu0 %v799, 96
    %v841 = vpop.permute.xlu0 %840
    %842 = vrot.lane.b32.xlu0 %v800, 96
    %v843 = vpop.permute.xlu0 %842
    %844 = vrot.lane.b32.xlu0 %v801, 96
    %v845 = vpop.permute.xlu0 %844
    %846 = vrot.lane.b32.xlu0 %v802, 96
    %v847 = vpop.permute.xlu0 %846
    %848 = vrot.lane.b32.xlu0 %v803, 96
    %v849 = vpop.permute.xlu0 %848
    %850 = vrot.lane.b32.xlu0 %v804, 96
    %v851 = vpop.permute.xlu0 %850
    %852 = vrot.lane.b32.xlu0 %v805, 96
    %v853 = vpop.permute.xlu0 %852
    %854 = vrot.lane.b32.xlu0 %v184, 63
    %v855 = vpop.permute.xlu0 %854
    %856 = vrot.lane.b32.xlu0 %v185, 63
    %v857 = vpop.permute.xlu0 %856
    %858 = vrot.lane.b32.xlu0 %v186, 63
    %v859 = vpop.permute.xlu0 %858
    %860 = vrot.lane.b32.xlu0 %v187, 63
    %v861 = vpop.permute.xlu0 %860
    %866 = vrot.lane.b32.xlu0 %v189, 63
    %v867 = vpop.permute.xlu0 %866
    %v869 = vsel %vm210, %v823, 0
    %v871 = vsel %vm210, %v825, 0
    %v873 = vsel %vm210, %v827, 0
    %v875 = vsel %vm210, %v829, 0
    %v877 = vsel %vm210, %v831, 0
    %v879 = vsel %vm210, %v833, 0
    %v881 = vsel %vm210, %v835, 0
    %v883 = vsel %vm210, %v837, 0
    %v885 = vsel %vm210, %v839, 0
    %v887 = vsel %vm210, %v841, 0
    %v889 = vsel %vm210, %v843, 0
    %v891 = vsel %vm210, %v845, 0
    %v893 = vsel %vm210, %v847, 0
    %v895 = vsel %vm210, %v849, 0
    %v897 = vsel %vm210, %v851, 0
    %v899 = vsel %vm210, %v853, 0
    %901 = vmatpush.msra.mxu0 0.0
    %902 = vmatpush.msra.mxu0 0.0
    %903 = vmatpush.msra.mxu0 0.0
    %904 = vmatpush.msra.mxu0 0.0
    %905 = vmatpush.msra.mxu0 0.0
    %906 = vmatpush.msra.mxu0 0.0
    %907 = vmatpush.msra.mxu0 0.0
    %908 = vmatpush.msra.mxu0 0.0
    %909 = vmatpush.msra.mxu0 0.0
    %910 = vmatpush.msra.mxu0 0.0
    %911 = vmatpush.msra.mxu0 0.0
    %912 = vmatpush.msra.mxu0 0.0
    %913 = vmatpush.msra.mxu0 %v861
    %914 = vmatpush.msra.mxu0 %v859
    %915 = vmatpush.msra.mxu0 %v857
    %916 = vmatpush.msra.mxu0 %v855
    %917 = vmatmul.f32.gmra.mxu0 %v869
    %v918 = vpop.f32.mrf.mxu0
    %v919 = vadd.f32 %v867, %v918
    %920 = vmatmul.f32.gmra.mxu0 %v871
    %v921 = vpop.f32.mrf.mxu0
    %v922 = vadd.f32 %v867, %v921
    %923 = vmatmul.f32.gmra.mxu0 %v873
    %v924 = vpop.f32.mrf.mxu0
    %v925 = vadd.f32 %v867, %v924
    %926 = vmatmul.f32.gmra.mxu0 %v875
    %v927 = vpop.f32.mrf.mxu0
    %v928 = vadd.f32 %v867, %v927
    %929 = vmatmul.f32.gmra.mxu0 %v877
    %v930 = vpop.f32.mrf.mxu0
    %v931 = vadd.f32 %v867, %v930
    %932 = vmatmul.f32.gmra.mxu0 %v879
    %v933 = vpop.f32.mrf.mxu0
    %v934 = vadd.f32 %v867, %v933
    %935 = vmatmul.f32.gmra.mxu0 %v881
    %v936 = vpop.f32.mrf.mxu0
    %v937 = vadd.f32 %v867, %v936
    %938 = vmatmul.f32.gmra.mxu0 %v883
    %v939 = vpop.f32.mrf.mxu0
    %v940 = vadd.f32 %v867, %v939
    %941 = vmatmul.f32.gmra.mxu0 %v885
    %v942 = vpop.f32.mrf.mxu0
    %v943 = vadd.f32 %v867, %v942
    %944 = vmatmul.f32.gmra.mxu0 %v887
    %v945 = vpop.f32.mrf.mxu0
    %v946 = vadd.f32 %v867, %v945
    %947 = vmatmul.f32.gmra.mxu0 %v889
    %v948 = vpop.f32.mrf.mxu0
    %v949 = vadd.f32 %v867, %v948
    %950 = vmatmul.f32.gmra.mxu0 %v891
    %v951 = vpop.f32.mrf.mxu0
    %v952 = vadd.f32 %v867, %v951
    %953 = vmatmul.f32.gmra.mxu0 %v893
    %v954 = vpop.f32.mrf.mxu0
    %v955 = vadd.f32 %v867, %v954
    %956 = vmatmul.f32.gmra.mxu0 %v895
    %v957 = vpop.f32.mrf.mxu0
    %v958 = vadd.f32 %v867, %v957
    %959 = vmatmul.f32.gmra.mxu0 %v897
    %v960 = vpop.f32.mrf.mxu0
    %v961 = vadd.f32 %v867, %v960
    %962 = vmatmul.f32.gmra.mxu0 %v899
    %v963 = vpop.f32.mrf.mxu0
    %v964 = vadd.f32 %v867, %v963
    %965 = vdwg.mxu0
    %967 = vset.pattern.permute.xlu0 0
    %968 = vperm.xlu0 %967, %v919
    %v969 = vpop.permute.xlu0 %968
    %972 = vset.pattern.permute.xlu0 0
    %973 = vperm.xlu0 %972, %v922
    %v974 = vpop.permute.xlu0 %973
    %977 = vset.pattern.permute.xlu0 0
    %978 = vperm.xlu0 %977, %v925
    %v979 = vpop.permute.xlu0 %978
    %982 = vset.pattern.permute.xlu0 0
    %983 = vperm.xlu0 %982, %v928
    %v984 = vpop.permute.xlu0 %983
    %987 = vset.pattern.permute.xlu0 0
    %988 = vperm.xlu0 %987, %v931
    %v989 = vpop.permute.xlu0 %988
    %992 = vset.pattern.permute.xlu0 0
    %993 = vperm.xlu0 %992, %v934
    %v994 = vpop.permute.xlu0 %993
    %997 = vset.pattern.permute.xlu0 0
    %998 = vperm.xlu0 %997, %v937
    %v999 = vpop.permute.xlu0 %998
    %1002 = vset.pattern.permute.xlu0 0
    %1003 = vperm.xlu0 %1002, %v940
    %v1004 = vpop.permute.xlu0 %1003
    %1007 = vset.pattern.permute.xlu0 0
    %1008 = vperm.xlu0 %1007, %v943
    %v1009 = vpop.permute.xlu0 %1008
    %1012 = vset.pattern.permute.xlu0 0
    %1013 = vperm.xlu0 %1012, %v946
    %v1014 = vpop.permute.xlu0 %1013
    %1017 = vset.pattern.permute.xlu0 0
    %1018 = vperm.xlu0 %1017, %v949
    %v1019 = vpop.permute.xlu0 %1018
    %1022 = vset.pattern.permute.xlu0 0
    %1023 = vperm.xlu0 %1022, %v952
    %v1024 = vpop.permute.xlu0 %1023
    %1027 = vset.pattern.permute.xlu0 0
    %1028 = vperm.xlu0 %1027, %v955
    %v1029 = vpop.permute.xlu0 %1028
    %1032 = vset.pattern.permute.xlu0 0
    %1033 = vperm.xlu0 %1032, %v958
    %v1034 = vpop.permute.xlu0 %1033
    %1037 = vset.pattern.permute.xlu0 0
    %1038 = vperm.xlu0 %1037, %v961
    %v1039 = vpop.permute.xlu0 %1038
    %1042 = vset.pattern.permute.xlu0 0
    %1043 = vperm.xlu0 %1042, %v964
    %v1044 = vpop.permute.xlu0 %1043
    %v1046 = vmul.f32 %v969, %v693
    %v1047 = vmul.f32 %v974, %v693
    %v1048 = vmul.f32 %v979, %v693
    %v1049 = vmul.f32 %v984, %v693
    %v1050 = vmul.f32 %v989, %v693
    %v1051 = vmul.f32 %v994, %v693
    %v1052 = vmul.f32 %v999, %v693
    %v1053 = vmul.f32 %v1004, %v693
    %v1054 = vmul.f32 %v1009, %v693
    %v1055 = vmul.f32 %v1014, %v693
    %v1056 = vmul.f32 %v1019, %v693
    %v1057 = vmul.f32 %v1024, %v693
    %v1058 = vmul.f32 %v1029, %v693
    %v1059 = vmul.f32 %v1034, %v693
    %v1060 = vmul.f32 %v1039, %v693
    %v1061 = vmul.f32 %v1044, %v693
    %v1062 = vadd.f32 %v774, %v1046
    %v1063 = vadd.f32 %v775, %v1047
    %v1064 = vadd.f32 %v776, %v1048
    %v1065 = vadd.f32 %v777, %v1049
    %v1066 = vadd.f32 %v778, %v1050
    %v1067 = vadd.f32 %v779, %v1051
    %v1068 = vadd.f32 %v780, %v1052
    %v1069 = vadd.f32 %v781, %v1053
    %v1070 = vadd.f32 %v782, %v1054
    %v1071 = vadd.f32 %v783, %v1055
    %v1072 = vadd.f32 %v784, %v1056
    %v1073 = vadd.f32 %v785, %v1057
    %v1074 = vadd.f32 %v786, %v1058
    %v1075 = vadd.f32 %v787, %v1059
    %v1076 = vadd.f32 %v788, %v1060
    %v1077 = vadd.f32 %v789, %v1061
    %v1078 = vmax.f32 %v1062, 0.0
    %v1079 = vmax.f32 %v1063, 0.0
    %v1080 = vmax.f32 %v1064, 0.0
    %v1081 = vmax.f32 %v1065, 0.0
    %v1082 = vmax.f32 %v1066, 0.0
    %v1083 = vmax.f32 %v1067, 0.0
    %v1084 = vmax.f32 %v1068, 0.0
    %v1085 = vmax.f32 %v1069, 0.0
    %v1086 = vmax.f32 %v1070, 0.0
    %v1087 = vmax.f32 %v1071, 0.0
    %v1088 = vmax.f32 %v1072, 0.0
    %v1089 = vmax.f32 %v1073, 0.0
    %v1090 = vmax.f32 %v1074, 0.0
    %v1091 = vmax.f32 %v1075, 0.0
    %v1092 = vmax.f32 %v1076, 0.0
    %v1093 = vmax.f32 %v1077, 0.0
    %1110 = vrot.lane.b32.xlu0 %v1078, 64
    %v1111 = vpop.permute.xlu0 %1110
    %1112 = vrot.lane.b32.xlu0 %v1079, 64
    %v1113 = vpop.permute.xlu0 %1112
    %1114 = vrot.lane.b32.xlu0 %v1080, 64
    %v1115 = vpop.permute.xlu0 %1114
    %1116 = vrot.lane.b32.xlu0 %v1081, 64
    %v1117 = vpop.permute.xlu0 %1116
    %1118 = vrot.lane.b32.xlu0 %v1082, 64
    %v1119 = vpop.permute.xlu0 %1118
    %1120 = vrot.lane.b32.xlu0 %v1083, 64
    %v1121 = vpop.permute.xlu0 %1120
    %1122 = vrot.lane.b32.xlu0 %v1084, 64
    %v1123 = vpop.permute.xlu0 %1122
    %1124 = vrot.lane.b32.xlu0 %v1085, 64
    %v1125 = vpop.permute.xlu0 %1124
    %1126 = vrot.lane.b32.xlu0 %v1086, 64
    %v1127 = vpop.permute.xlu0 %1126
    %1128 = vrot.lane.b32.xlu0 %v1087, 64
    %v1129 = vpop.permute.xlu0 %1128
    %1130 = vrot.lane.b32.xlu0 %v1088, 64
    %v1131 = vpop.permute.xlu0 %1130
    %1132 = vrot.lane.b32.xlu0 %v1089, 64
    %v1133 = vpop.permute.xlu0 %1132
    %1134 = vrot.lane.b32.xlu0 %v1090, 64
    %v1135 = vpop.permute.xlu0 %1134
    %1136 = vrot.lane.b32.xlu0 %v1091, 64
    %v1137 = vpop.permute.xlu0 %1136
    %1138 = vrot.lane.b32.xlu0 %v1092, 64
    %v1139 = vpop.permute.xlu0 %1138
    %1140 = vrot.lane.b32.xlu0 %v1093, 64
    %v1141 = vpop.permute.xlu0 %1140
    %v1142 = vsel %vm210, %v1111, 0
    %v1144 = vsel %vm210, %v1113, 0
    %v1146 = vsel %vm210, %v1115, 0
    %v1148 = vsel %vm210, %v1117, 0
    %v1150 = vsel %vm210, %v1119, 0
    %v1152 = vsel %vm210, %v1121, 0
    %v1154 = vsel %vm210, %v1123, 0
    %v1156 = vsel %vm210, %v1125, 0
    %v1158 = vsel %vm210, %v1127, 0
    %v1160 = vsel %vm210, %v1129, 0
    %v1162 = vsel %vm210, %v1131, 0
    %v1164 = vsel %vm210, %v1133, 0
    %v1166 = vsel %vm210, %v1135, 0
    %v1168 = vsel %vm210, %v1137, 0
    %v1170 = vsel %vm210, %v1139, 0
    %v1172 = vsel %vm210, %v1141, 0
    %1174 = vmatpush.msra.mxu0 0.0
    %1175 = vmatpush.msra.mxu0 0.0
    %1176 = vmatpush.msra.mxu0 0.0
    %1177 = vmatpush.msra.mxu0 0.0
    %1178 = vmatpush.msra.mxu0 0.0
    %1179 = vmatpush.msra.mxu0 0.0
    %1180 = vmatpush.msra.mxu0 0.0
    %1181 = vmatpush.msra.mxu0 0.0
    %1182 = vmatpush.msra.mxu0 0.0
    %1183 = vmatpush.msra.mxu0 0.0
    %1184 = vmatpush.msra.mxu0 0.0
    %1185 = vmatpush.msra.mxu0 0.0
    %1186 = vmatpush.msra.mxu0 %v187
    %1187 = vmatpush.msra.mxu0 %v186
    %1188 = vmatpush.msra.mxu0 %v185
    %1189 = vmatpush.msra.mxu0 %v184
    %1190 = vmatmul.f32.gmra.mxu0 %v1142
    %v1191 = vpop.f32.mrf.mxu0
    %v1192 = vadd.f32 %v189, %v1191
    %1193 = vmatmul.f32.gmra.mxu0 %v1144
    %v1194 = vpop.f32.mrf.mxu0
    %v1195 = vadd.f32 %v189, %v1194
    %1196 = vmatmul.f32.gmra.mxu0 %v1146
    %v1197 = vpop.f32.mrf.mxu0
    %v1198 = vadd.f32 %v189, %v1197
    %1199 = vmatmul.f32.gmra.mxu0 %v1148
    %v1200 = vpop.f32.mrf.mxu0
    %v1201 = vadd.f32 %v189, %v1200
    %1202 = vmatmul.f32.gmra.mxu0 %v1150
    %v1203 = vpop.f32.mrf.mxu0
    %v1204 = vadd.f32 %v189, %v1203
    %1205 = vmatmul.f32.gmra.mxu0 %v1152
    %v1206 = vpop.f32.mrf.mxu0
    %v1207 = vadd.f32 %v189, %v1206
    %1208 = vmatmul.f32.gmra.mxu0 %v1154
    %v1209 = vpop.f32.mrf.mxu0
    %v1210 = vadd.f32 %v189, %v1209
    %1211 = vmatmul.f32.gmra.mxu0 %v1156
    %v1212 = vpop.f32.mrf.mxu0
    %v1213 = vadd.f32 %v189, %v1212
    %1214 = vmatmul.f32.gmra.mxu0 %v1158
    %v1215 = vpop.f32.mrf.mxu0
    %v1216 = vadd.f32 %v189, %v1215
    %1217 = vmatmul.f32.gmra.mxu0 %v1160
    %v1218 = vpop.f32.mrf.mxu0
    %v1219 = vadd.f32 %v189, %v1218
    %1220 = vmatmul.f32.gmra.mxu0 %v1162
    %v1221 = vpop.f32.mrf.mxu0
    %v1222 = vadd.f32 %v189, %v1221
    %1223 = vmatmul.f32.gmra.mxu0 %v1164
    %v1224 = vpop.f32.mrf.mxu0
    %v1225 = vadd.f32 %v189, %v1224
    %1226 = vmatmul.f32.gmra.mxu0 %v1166
    %v1227 = vpop.f32.mrf.mxu0
    %v1228 = vadd.f32 %v189, %v1227
    %1229 = vmatmul.f32.gmra.mxu0 %v1168
    %v1230 = vpop.f32.mrf.mxu0
    %v1231 = vadd.f32 %v189, %v1230
    %1232 = vmatmul.f32.gmra.mxu0 %v1170
    %v1233 = vpop.f32.mrf.mxu0
    %v1234 = vadd.f32 %v189, %v1233
    %1235 = vmatmul.f32.gmra.mxu0 %v1172
    %v1236 = vpop.f32.mrf.mxu0
    %v1237 = vadd.f32 %v189, %v1236
    %1238 = vdwg.mxu0
    %v1239 = vmul.f32 %v1192, 0.5
    %v1240 = vmul.f32 %v1195, 0.5
    %v1241 = vmul.f32 %v1198, 0.5
    %v1242 = vmul.f32 %v1201, 0.5
    %v1243 = vmul.f32 %v1204, 0.5
    %v1244 = vmul.f32 %v1207, 0.5
    %v1245 = vmul.f32 %v1210, 0.5
    %v1246 = vmul.f32 %v1213, 0.5
    %v1247 = vmul.f32 %v1216, 0.5
    %v1248 = vmul.f32 %v1219, 0.5
    %v1249 = vmul.f32 %v1222, 0.5
    %v1250 = vmul.f32 %v1225, 0.5
    %v1251 = vmul.f32 %v1228, 0.5
    %v1252 = vmul.f32 %v1231, 0.5
    %v1253 = vmul.f32 %v1234, 0.5
    %v1254 = vmul.f32 %v1237, 0.5
    %v1255 = vmul.f32 %v1239, 1.442695
    %v1256 = vpow.pop %v1255
    %v1257 = vmul.f32 %v1240, 1.442695
    %v1258 = vpow.pop %v1257
    %v1259 = vmul.f32 %v1241, 1.442695
    %v1260 = vpow.pop %v1259
    %v1261 = vmul.f32 %v1242, 1.442695
    %v1262 = vpow.pop %v1261
    %v1263 = vmul.f32 %v1243, 1.442695
    %v1264 = vpow.pop %v1263
    %v1265 = vmul.f32 %v1244, 1.442695
    %v1266 = vpow.pop %v1265
    %v1267 = vmul.f32 %v1245, 1.442695
    %v1268 = vpow.pop %v1267
    %v1269 = vmul.f32 %v1246, 1.442695
    %v1270 = vpow.pop %v1269
    %v1271 = vmul.f32 %v1247, 1.442695
    %v1272 = vpow.pop %v1271
    %v1273 = vmul.f32 %v1248, 1.442695
    %v1274 = vpow.pop %v1273
    %v1275 = vmul.f32 %v1249, 1.442695
    %v1276 = vpow.pop %v1275
    %v1277 = vmul.f32 %v1250, 1.442695
    %v1278 = vpow.pop %v1277
    %v1279 = vmul.f32 %v1251, 1.442695
    %v1280 = vpow.pop %v1279
    %v1281 = vmul.f32 %v1252, 1.442695
    %v1282 = vpow.pop %v1281
    %v1283 = vmul.f32 %v1253, 1.442695
    %v1284 = vpow.pop %v1283
    %v1285 = vmul.f32 %v1254, 1.442695
    %v1286 = vpow.pop %v1285
    %1303 = vrot.lane.b32.xlu0 %v1256, 96
    %v1304 = vpop.permute.xlu0 %1303
    %1305 = vrot.lane.b32.xlu0 %v1258, 96
    %v1306 = vpop.permute.xlu0 %1305
    %1307 = vrot.lane.b32.xlu0 %v1260, 96
    %v1308 = vpop.permute.xlu0 %1307
    %1309 = vrot.lane.b32.xlu0 %v1262, 96
    %v1310 = vpop.permute.xlu0 %1309
    %1311 = vrot.lane.b32.xlu0 %v1264, 96
    %v1312 = vpop.permute.xlu0 %1311
    %1313 = vrot.lane.b32.xlu0 %v1266, 96
    %v1314 = vpop.permute.xlu0 %1313
    %1315 = vrot.lane.b32.xlu0 %v1268, 96
    %v1316 = vpop.permute.xlu0 %1315
    %1317 = vrot.lane.b32.xlu0 %v1270, 96
    %v1318 = vpop.permute.xlu0 %1317
    %1319 = vrot.lane.b32.xlu0 %v1272, 96
    %v1320 = vpop.permute.xlu0 %1319
    %1321 = vrot.lane.b32.xlu0 %v1274, 96
    %v1322 = vpop.permute.xlu0 %1321
    %1323 = vrot.lane.b32.xlu0 %v1276, 96
    %v1324 = vpop.permute.xlu0 %1323
    %1325 = vrot.lane.b32.xlu0 %v1278, 96
    %v1326 = vpop.permute.xlu0 %1325
    %1327 = vrot.lane.b32.xlu0 %v1280, 96
    %v1328 = vpop.permute.xlu0 %1327
    %1329 = vrot.lane.b32.xlu0 %v1282, 96
    %v1330 = vpop.permute.xlu0 %1329
    %1331 = vrot.lane.b32.xlu0 %v1284, 96
    %v1332 = vpop.permute.xlu0 %1331
    %1333 = vrot.lane.b32.xlu0 %v1286, 96
    %v1334 = vpop.permute.xlu0 %1333
    %v1351 = vmul.f32 %v34, %v1304
    %v1352 = vmul.f32 %v35, %v1306
    %v1353 = vmul.f32 %v36, %v1308
    %v1354 = vmul.f32 %v37, %v1310
    %v1355 = vmul.f32 %v38, %v1312
    %v1356 = vmul.f32 %v39, %v1314
    %v1357 = vmul.f32 %v40, %v1316
    %v1358 = vmul.f32 %v41, %v1318
    %v1359 = vmul.f32 %v42, %v1320
    %v1360 = vmul.f32 %v43, %v1322
    %v1361 = vmul.f32 %v44, %v1324
    %v1362 = vmul.f32 %v45, %v1326
    %v1363 = vmul.f32 %v46, %v1328
    %v1364 = vmul.f32 %v47, %v1330
    %v1365 = vmul.f32 %v48, %v1332
    %v1366 = vmul.f32 %v49, %v1334
    %v1367 = vadd.f32 %v1192, %v1351
    %v1368 = vadd.f32 %v1195, %v1352
    %v1369 = vadd.f32 %v1198, %v1353
    %v1370 = vadd.f32 %v1201, %v1354
    %v1371 = vadd.f32 %v1204, %v1355
    %v1372 = vadd.f32 %v1207, %v1356
    %v1373 = vadd.f32 %v1210, %v1357
    %v1374 = vadd.f32 %v1213, %v1358
    %v1375 = vadd.f32 %v1216, %v1359
    %v1376 = vadd.f32 %v1219, %v1360
    %v1377 = vadd.f32 %v1222, %v1361
    %v1378 = vadd.f32 %v1225, %v1362
    %v1379 = vadd.f32 %v1228, %v1363
    %v1380 = vadd.f32 %v1231, %v1364
    %v1381 = vadd.f32 %v1234, %v1365
    %v1382 = vadd.f32 %v1237, %v1366
    %v1383 = vld [vmem:[%s2 + $0x30] sm:$0xff]
    %v1384 = vld [vmem:[%s2 + $0x38] sm:$0xff]
    %v1385 = vld [vmem:[%s2 + $0x40] sm:$0xff]
    %v1386 = vld [vmem:[%s2 + $0x48] sm:$0xff]
    %v1387 = vld [vmem:[%s3 + $0x3] sm:$0x1]
    %v1388 = vperm.slane %v1387, 0
    %v1390 = vsel %vm210, %v1367, 0
    %v1393 = vsel %vm210, %v1368, 0
    %v1396 = vsel %vm210, %v1369, 0
    %v1399 = vsel %vm210, %v1370, 0
    %v1402 = vsel %vm210, %v1371, 0
    %v1405 = vsel %vm210, %v1372, 0
    %v1408 = vsel %vm210, %v1373, 0
    %v1411 = vsel %vm210, %v1374, 0
    %v1414 = vsel %vm210, %v1375, 0
    %v1417 = vsel %vm210, %v1376, 0
    %v1420 = vsel %vm210, %v1377, 0
    %v1423 = vsel %vm210, %v1378, 0
    %v1426 = vsel %vm210, %v1379, 0
    %v1429 = vsel %vm210, %v1380, 0
    %v1432 = vsel %vm210, %v1381, 0
    %v1435 = vsel %vm210, %v1382, 0
    %1437 = vmatpush.msra.mxu0 0.0
    %1438 = vmatpush.msra.mxu0 0.0
    %1439 = vmatpush.msra.mxu0 0.0
    %1440 = vmatpush.msra.mxu0 0.0
    %1441 = vmatpush.msra.mxu0 0.0
    %1442 = vmatpush.msra.mxu0 0.0
    %1443 = vmatpush.msra.mxu0 0.0
    %1444 = vmatpush.msra.mxu0 0.0
    %1445 = vmatpush.msra.mxu0 0.0
    %1446 = vmatpush.msra.mxu0 0.0
    %1447 = vmatpush.msra.mxu0 0.0
    %1448 = vmatpush.msra.mxu0 0.0
    %1449 = vmatpush.msra.mxu0 %v1386
    %1450 = vmatpush.msra.mxu0 %v1385
    %1451 = vmatpush.msra.mxu0 %v1384
    %1452 = vmatpush.msra.mxu0 %v1383
    %1453 = vmatmul.f32.gmra.mxu0 %v1390
    %v1454 = vpop.f32.mrf.mxu0
    %v1455 = vadd.f32 %v1388, %v1454
    %1456 = vmatmul.f32.gmra.mxu0 %v1393
    %v1457 = vpop.f32.mrf.mxu0
    %v1458 = vadd.f32 %v1388, %v1457
    %1459 = vmatmul.f32.gmra.mxu0 %v1396
    %v1460 = vpop.f32.mrf.mxu0
    %v1461 = vadd.f32 %v1388, %v1460
    %1462 = vmatmul.f32.gmra.mxu0 %v1399
    %v1463 = vpop.f32.mrf.mxu0
    %v1464 = vadd.f32 %v1388, %v1463
    %1465 = vmatmul.f32.gmra.mxu0 %v1402
    %v1466 = vpop.f32.mrf.mxu0
    %v1467 = vadd.f32 %v1388, %v1466
    %1468 = vmatmul.f32.gmra.mxu0 %v1405
    %v1469 = vpop.f32.mrf.mxu0
    %v1470 = vadd.f32 %v1388, %v1469
    %1471 = vmatmul.f32.gmra.mxu0 %v1408
    %v1472 = vpop.f32.mrf.mxu0
    %v1473 = vadd.f32 %v1388, %v1472
    %1474 = vmatmul.f32.gmra.mxu0 %v1411
    %v1475 = vpop.f32.mrf.mxu0
    %v1476 = vadd.f32 %v1388, %v1475
    %1477 = vmatmul.f32.gmra.mxu0 %v1414
    %v1478 = vpop.f32.mrf.mxu0
    %v1479 = vadd.f32 %v1388, %v1478
    %1480 = vmatmul.f32.gmra.mxu0 %v1417
    %v1481 = vpop.f32.mrf.mxu0
    %v1482 = vadd.f32 %v1388, %v1481
    %1483 = vmatmul.f32.gmra.mxu0 %v1420
    %v1484 = vpop.f32.mrf.mxu0
    %v1485 = vadd.f32 %v1388, %v1484
    %1486 = vmatmul.f32.gmra.mxu0 %v1423
    %v1487 = vpop.f32.mrf.mxu0
    %v1488 = vadd.f32 %v1388, %v1487
    %1489 = vmatmul.f32.gmra.mxu0 %v1426
    %v1490 = vpop.f32.mrf.mxu0
    %v1491 = vadd.f32 %v1388, %v1490
    %1492 = vmatmul.f32.gmra.mxu0 %v1429
    %v1493 = vpop.f32.mrf.mxu0
    %v1494 = vadd.f32 %v1388, %v1493
    %1495 = vmatmul.f32.gmra.mxu0 %v1432
    %v1496 = vpop.f32.mrf.mxu0
    %v1497 = vadd.f32 %v1388, %v1496
    %1498 = vmatmul.f32.gmra.mxu0 %v1435
    %v1499 = vpop.f32.mrf.mxu0
    %v1500 = vadd.f32 %v1388, %v1499
    %1501 = vdwg.mxu0
    %v1502 = vmax.f32 %v1455, 0.0
    %v1503 = vmax.f32 %v1458, 0.0
    %v1504 = vmax.f32 %v1461, 0.0
    %v1505 = vmax.f32 %v1464, 0.0
    %v1506 = vmax.f32 %v1467, 0.0
    %v1507 = vmax.f32 %v1470, 0.0
    %v1508 = vmax.f32 %v1473, 0.0
    %v1509 = vmax.f32 %v1476, 0.0
    %v1510 = vmax.f32 %v1479, 0.0
    %v1511 = vmax.f32 %v1482, 0.0
    %v1512 = vmax.f32 %v1485, 0.0
    %v1513 = vmax.f32 %v1488, 0.0
    %v1514 = vmax.f32 %v1491, 0.0
    %v1515 = vmax.f32 %v1494, 0.0
    %v1516 = vmax.f32 %v1497, 0.0
    %v1517 = vmax.f32 %v1500, 0.0
    %v1518 = vld [vmem:[%s2 + $0x50] sm:$0xff]
    %v1519 = vld [vmem:[%s2 + $0x58] sm:$0xff]
    %v1520 = vld [vmem:[%s2 + $0x60] sm:$0xff]
    %v1521 = vld [vmem:[%s2 + $0x68] sm:$0xff]
    %v1522 = vld [vmem:[%s2 + $0x70] sm:$0xff]
    %v1523 = vld [vmem:[%s2 + $0x78] sm:$0xff]
    %v1524 = vld [vmem:[%s2 + $0x80] sm:$0xff]
    %v1525 = vld [vmem:[%s2 + $0x88] sm:$0xff]
    %v1526 = vld [vmem:[%s2 + $0x90] sm:$0xff]
    %v1527 = vld [vmem:[%s2 + $0x98] sm:$0xff]
    %v1528 = vld [vmem:[%s2 + $0xa0] sm:$0xff]
    %v1529 = vld [vmem:[%s2 + $0xa8] sm:$0xff]
    %v1530 = vld [vmem:[%s2 + $0xb0] sm:$0xff]
    %v1531 = vld [vmem:[%s2 + $0xb8] sm:$0xff]
    %v1532 = vld [vmem:[%s2 + $0xc0] sm:$0xff]
    %v1533 = vld [vmem:[%s2 + $0xc8] sm:$0xff]
    %v1534 = vld [vmem:[%s3 + $0x4] sm:$0x1]
    %v1535 = vperm.slane %v1534, 0
    %1536 = vmatpush.msra.mxu0 %v1533
    %1537 = vmatpush.msra.mxu0 %v1532
    %1538 = vmatpush.msra.mxu0 %v1531
    %1539 = vmatpush.msra.mxu0 %v1530
    %1540 = vmatpush.msra.mxu0 %v1529
    %1541 = vmatpush.msra.mxu0 %v1528
    %1542 = vmatpush.msra.mxu0 %v1527
    %1543 = vmatpush.msra.mxu0 %v1526
    %1544 = vmatpush.msra.mxu0 %v1525
    %1545 = vmatpush.msra.mxu0 %v1524
    %1546 = vmatpush.msra.mxu0 %v1523
    %1547 = vmatpush.msra.mxu0 %v1522
    %1548 = vmatpush.msra.mxu0 %v1521
    %1549 = vmatpush.msra.mxu0 %v1520
    %1550 = vmatpush.msra.mxu0 %v1519
    %1551 = vmatpush.msra.mxu0 %v1518
    %1552 = vmatmul.f32.gmra.mxu0 %v1502
    %v1553 = vpop.f32.mrf.mxu0
    %v1554 = vadd.f32 %v1535, %v1553
    %1555 = vmatmul.f32.gmra.mxu0 %v1503
    %v1556 = vpop.f32.mrf.mxu0
    %v1557 = vadd.f32 %v1535, %v1556
    %1558 = vmatmul.f32.gmra.mxu0 %v1504
    %v1559 = vpop.f32.mrf.mxu0
    %v1560 = vadd.f32 %v1535, %v1559
    %1561 = vmatmul.f32.gmra.mxu0 %v1505
    %v1562 = vpop.f32.mrf.mxu0
    %v1563 = vadd.f32 %v1535, %v1562
    %1564 = vmatmul.f32.gmra.mxu0 %v1506
    %v1565 = vpop.f32.mrf.mxu0
    %v1566 = vadd.f32 %v1535, %v1565
    %1567 = vmatmul.f32.gmra.mxu0 %v1507
    %v1568 = vpop.f32.mrf.mxu0
    %v1569 = vadd.f32 %v1535, %v1568
    %1570 = vmatmul.f32.gmra.mxu0 %v1508
    %v1571 = vpop.f32.mrf.mxu0
    %v1572 = vadd.f32 %v1535, %v1571
    %1573 = vmatmul.f32.gmra.mxu0 %v1509
    %v1574 = vpop.f32.mrf.mxu0
    %v1575 = vadd.f32 %v1535, %v1574
    %1576 = vmatmul.f32.gmra.mxu0 %v1510
    %v1577 = vpop.f32.mrf.mxu0
    %v1578 = vadd.f32 %v1535, %v1577
    %1579 = vmatmul.f32.gmra.mxu0 %v1511
    %v1580 = vpop.f32.mrf.mxu0
    %v1581 = vadd.f32 %v1535, %v1580
    %1582 = vmatmul.f32.gmra.mxu0 %v1512
    %v1583 = vpop.f32.mrf.mxu0
    %v1584 = vadd.f32 %v1535, %v1583
    %1585 = vmatmul.f32.gmra.mxu0 %v1513
    %v1586 = vpop.f32.mrf.mxu0
    %v1587 = vadd.f32 %v1535, %v1586
    %1588 = vmatmul.f32.gmra.mxu0 %v1514
    %v1589 = vpop.f32.mrf.mxu0
    %v1590 = vadd.f32 %v1535, %v1589
    %1591 = vmatmul.f32.gmra.mxu0 %v1515
    %v1592 = vpop.f32.mrf.mxu0
    %v1593 = vadd.f32 %v1535, %v1592
    %1594 = vmatmul.f32.gmra.mxu0 %v1516
    %v1595 = vpop.f32.mrf.mxu0
    %v1596 = vadd.f32 %v1535, %v1595
    %1597 = vmatmul.f32.gmra.mxu0 %v1517
    %v1598 = vpop.f32.mrf.mxu0
    %v1599 = vadd.f32 %v1535, %v1598
    %1600 = vdwg.mxu0
    %v1601 = vsub.f32 0.0, %v1554
    %v1602 = vsub.f32 0.0, %v1557
    %v1603 = vsub.f32 0.0, %v1560
    %v1604 = vsub.f32 0.0, %v1563
    %v1605 = vsub.f32 0.0, %v1566
    %v1606 = vsub.f32 0.0, %v1569
    %v1607 = vsub.f32 0.0, %v1572
    %v1608 = vsub.f32 0.0, %v1575
    %v1609 = vsub.f32 0.0, %v1578
    %v1610 = vsub.f32 0.0, %v1581
    %v1611 = vsub.f32 0.0, %v1584
    %v1612 = vsub.f32 0.0, %v1587
    %v1613 = vsub.f32 0.0, %v1590
    %v1614 = vsub.f32 0.0, %v1593
    %v1615 = vsub.f32 0.0, %v1596
    %v1616 = vsub.f32 0.0, %v1599
    %v1617 = vmul.f32 %v1601, 1.442695
    %v1618 = vpow.pop %v1617
    %v1619 = vmul.f32 %v1602, 1.442695
    %v1620 = vpow.pop %v1619
    %v1621 = vmul.f32 %v1603, 1.442695
    %v1622 = vpow.pop %v1621
    %v1623 = vmul.f32 %v1604, 1.442695
    %v1624 = vpow.pop %v1623
    %v1625 = vmul.f32 %v1605, 1.442695
    %v1626 = vpow.pop %v1625
    %v1627 = vmul.f32 %v1606, 1.442695
    %v1628 = vpow.pop %v1627
    %v1629 = vmul.f32 %v1607, 1.442695
    %v1630 = vpow.pop %v1629
    %v1631 = vmul.f32 %v1608, 1.442695
    %v1632 = vpow.pop %v1631
    %v1633 = vmul.f32 %v1609, 1.442695
    %v1634 = vpow.pop %v1633
    %v1635 = vmul.f32 %v1610, 1.442695
    %v1636 = vpow.pop %v1635
    %v1637 = vmul.f32 %v1611, 1.442695
    %v1638 = vpow.pop %v1637
    %v1639 = vmul.f32 %v1612, 1.442695
    %v1640 = vpow.pop %v1639
    %v1641 = vmul.f32 %v1613, 1.442695
    %v1642 = vpow.pop %v1641
    %v1643 = vmul.f32 %v1614, 1.442695
    %v1644 = vpow.pop %v1643
    %v1645 = vmul.f32 %v1615, 1.442695
    %v1646 = vpow.pop %v1645
    %v1647 = vmul.f32 %v1616, 1.442695
    %v1648 = vpow.pop %v1647
    %v1649 = vadd.f32 %v1618, 1.0
    %v1650 = vadd.f32 %v1620, 1.0
    %v1651 = vadd.f32 %v1622, 1.0
    %v1652 = vadd.f32 %v1624, 1.0
    %v1653 = vadd.f32 %v1626, 1.0
    %v1654 = vadd.f32 %v1628, 1.0
    %v1655 = vadd.f32 %v1630, 1.0
    %v1656 = vadd.f32 %v1632, 1.0
    %v1657 = vadd.f32 %v1634, 1.0
    %v1658 = vadd.f32 %v1636, 1.0
    %v1659 = vadd.f32 %v1638, 1.0
    %v1660 = vadd.f32 %v1640, 1.0
    %v1661 = vadd.f32 %v1642, 1.0
    %v1662 = vadd.f32 %v1644, 1.0
    %v1663 = vadd.f32 %v1646, 1.0
    %v1664 = vadd.f32 %v1648, 1.0
    %v1665 = vrcp.pop %v1649
    %v1666 = vmul.f32 %v1649, %v1665
    %v1667 = vsub.f32 1.0, %v1666
    %v1668 = vmul.f32 %v1665, %v1667
    %v1669 = vadd.f32 %v1665, %v1668
    %vm1670 = vweird.f32 %v1649
    %vm1671 = vweird.f32 %v1665
    %vm1672 = vmor %vm1670, %vm1671
    %v1673 = vsel %vm1672, %v1665, %v1669
    %v1674 = vand.u32 2147483647, %v1649
    %vm1675 = vcmp.eq.f32.partialorder %v1674, 8.507059e+37
    %v1676 = vand.u32 %v1649, 2147483648
    %v1677 = vor.u32 1.1754944e-38, %v1676
    %v1678 = vsel %vm1675, %v1677, %v1673
    %v1679 = vrcp.pop %v1650
    %v1680 = vmul.f32 %v1650, %v1679
    %v1681 = vsub.f32 1.0, %v1680
    %v1682 = vmul.f32 %v1679, %v1681
    %v1683 = vadd.f32 %v1679, %v1682
    %vm1684 = vweird.f32 %v1650
    %vm1685 = vweird.f32 %v1679
    %vm1686 = vmor %vm1684, %vm1685
    %v1687 = vsel %vm1686, %v1679, %v1683
    %v1688 = vand.u32 2147483647, %v1650
    %vm1689 = vcmp.eq.f32.partialorder %v1688, 8.507059e+37
    %v1690 = vand.u32 %v1650, 2147483648
    %v1691 = vor.u32 1.1754944e-38, %v1690
    %v1692 = vsel %vm1689, %v1691, %v1687
    %v1693 = vrcp.pop %v1651
    %v1694 = vmul.f32 %v1651, %v1693
    %v1695 = vsub.f32 1.0, %v1694
    %v1696 = vmul.f32 %v1693, %v1695
    %v1697 = vadd.f32 %v1693, %v1696
    %vm1698 = vweird.f32 %v1651
    %vm1699 = vweird.f32 %v1693
    %vm1700 = vmor %vm1698, %vm1699
    %v1701 = vsel %vm1700, %v1693, %v1697
    %v1702 = vand.u32 2147483647, %v1651
    %vm1703 = vcmp.eq.f32.partialorder %v1702, 8.507059e+37
    %v1704 = vand.u32 %v1651, 2147483648
    %v1705 = vor.u32 1.1754944e-38, %v1704
    %v1706 = vsel %vm1703, %v1705, %v1701
    %v1707 = vrcp.pop %v1652
    %v1708 = vmul.f32 %v1652, %v1707
    %v1709 = vsub.f32 1.0, %v1708
    %v1710 = vmul.f32 %v1707, %v1709
    %v1711 = vadd.f32 %v1707, %v1710
    %vm1712 = vweird.f32 %v1652
    %vm1713 = vweird.f32 %v1707
    %vm1714 = vmor %vm1712, %vm1713
    %v1715 = vsel %vm1714, %v1707, %v1711
    %v1716 = vand.u32 2147483647, %v1652
    %vm1717 = vcmp.eq.f32.partialorder %v1716, 8.507059e+37
    %v1718 = vand.u32 %v1652, 2147483648
    %v1719 = vor.u32 1.1754944e-38, %v1718
    %v1720 = vsel %vm1717, %v1719, %v1715
    %v1721 = vrcp.pop %v1653
    %v1722 = vmul.f32 %v1653, %v1721
    %v1723 = vsub.f32 1.0, %v1722
    %v1724 = vmul.f32 %v1721, %v1723
    %v1725 = vadd.f32 %v1721, %v1724
    %vm1726 = vweird.f32 %v1653
    %vm1727 = vweird.f32 %v1721
    %vm1728 = vmor %vm1726, %vm1727
    %v1729 = vsel %vm1728, %v1721, %v1725
    %v1730 = vand.u32 2147483647, %v1653
    %vm1731 = vcmp.eq.f32.partialorder %v1730, 8.507059e+37
    %v1732 = vand.u32 %v1653, 2147483648
    %v1733 = vor.u32 1.1754944e-38, %v1732
    %v1734 = vsel %vm1731, %v1733, %v1729
    %v1735 = vrcp.pop %v1654
    %v1736 = vmul.f32 %v1654, %v1735
    %v1737 = vsub.f32 1.0, %v1736
    %v1738 = vmul.f32 %v1735, %v1737
    %v1739 = vadd.f32 %v1735, %v1738
    %vm1740 = vweird.f32 %v1654
    %vm1741 = vweird.f32 %v1735
    %vm1742 = vmor %vm1740, %vm1741
    %v1743 = vsel %vm1742, %v1735, %v1739
    %v1744 = vand.u32 2147483647, %v1654
    %vm1745 = vcmp.eq.f32.partialorder %v1744, 8.507059e+37
    %v1746 = vand.u32 %v1654, 2147483648
    %v1747 = vor.u32 1.1754944e-38, %v1746
    %v1748 = vsel %vm1745, %v1747, %v1743
    %v1749 = vrcp.pop %v1655
    %v1750 = vmul.f32 %v1655, %v1749
    %v1751 = vsub.f32 1.0, %v1750
    %v1752 = vmul.f32 %v1749, %v1751
    %v1753 = vadd.f32 %v1749, %v1752
    %vm1754 = vweird.f32 %v1655
    %vm1755 = vweird.f32 %v1749
    %vm1756 = vmor %vm1754, %vm1755
    %v1757 = vsel %vm1756, %v1749, %v1753
    %v1758 = vand.u32 2147483647, %v1655
    %vm1759 = vcmp.eq.f32.partialorder %v1758, 8.507059e+37
    %v1760 = vand.u32 %v1655, 2147483648
    %v1761 = vor.u32 1.1754944e-38, %v1760
    %v1762 = vsel %vm1759, %v1761, %v1757
    %v1763 = vrcp.pop %v1656
    %v1764 = vmul.f32 %v1656, %v1763
    %v1765 = vsub.f32 1.0, %v1764
    %v1766 = vmul.f32 %v1763, %v1765
    %v1767 = vadd.f32 %v1763, %v1766
    %vm1768 = vweird.f32 %v1656
    %vm1769 = vweird.f32 %v1763
    %vm1770 = vmor %vm1768, %vm1769
    %v1771 = vsel %vm1770, %v1763, %v1767
    %v1772 = vand.u32 2147483647, %v1656
    %vm1773 = vcmp.eq.f32.partialorder %v1772, 8.507059e+37
    %v1774 = vand.u32 %v1656, 2147483648
    %v1775 = vor.u32 1.1754944e-38, %v1774
    %v1776 = vsel %vm1773, %v1775, %v1771
    %v1777 = vrcp.pop %v1657
    %v1778 = vmul.f32 %v1657, %v1777
    %v1779 = vsub.f32 1.0, %v1778
    %v1780 = vmul.f32 %v1777, %v1779
    %v1781 = vadd.f32 %v1777, %v1780
    %vm1782 = vweird.f32 %v1657
    %vm1783 = vweird.f32 %v1777
    %vm1784 = vmor %vm1782, %vm1783
    %v1785 = vsel %vm1784, %v1777, %v1781
    %v1786 = vand.u32 2147483647, %v1657
    %vm1787 = vcmp.eq.f32.partialorder %v1786, 8.507059e+37
    %v1788 = vand.u32 %v1657, 2147483648
    %v1789 = vor.u32 1.1754944e-38, %v1788
    %v1790 = vsel %vm1787, %v1789, %v1785
    %v1791 = vrcp.pop %v1658
    %v1792 = vmul.f32 %v1658, %v1791
    %v1793 = vsub.f32 1.0, %v1792
    %v1794 = vmul.f32 %v1791, %v1793
    %v1795 = vadd.f32 %v1791, %v1794
    %vm1796 = vweird.f32 %v1658
    %vm1797 = vweird.f32 %v1791
    %vm1798 = vmor %vm1796, %vm1797
    %v1799 = vsel %vm1798, %v1791, %v1795
    %v1800 = vand.u32 2147483647, %v1658
    %vm1801 = vcmp.eq.f32.partialorder %v1800, 8.507059e+37
    %v1802 = vand.u32 %v1658, 2147483648
    %v1803 = vor.u32 1.1754944e-38, %v1802
    %v1804 = vsel %vm1801, %v1803, %v1799
    %v1805 = vrcp.pop %v1659
    %v1806 = vmul.f32 %v1659, %v1805
    %v1807 = vsub.f32 1.0, %v1806
    %v1808 = vmul.f32 %v1805, %v1807
    %v1809 = vadd.f32 %v1805, %v1808
    %vm1810 = vweird.f32 %v1659
    %vm1811 = vweird.f32 %v1805
    %vm1812 = vmor %vm1810, %vm1811
    %v1813 = vsel %vm1812, %v1805, %v1809
    %v1814 = vand.u32 2147483647, %v1659
    %vm1815 = vcmp.eq.f32.partialorder %v1814, 8.507059e+37
    %v1816 = vand.u32 %v1659, 2147483648
    %v1817 = vor.u32 1.1754944e-38, %v1816
    %v1818 = vsel %vm1815, %v1817, %v1813
    %v1819 = vrcp.pop %v1660
    %v1820 = vmul.f32 %v1660, %v1819
    %v1821 = vsub.f32 1.0, %v1820
    %v1822 = vmul.f32 %v1819, %v1821
    %v1823 = vadd.f32 %v1819, %v1822
    %vm1824 = vweird.f32 %v1660
    %vm1825 = vweird.f32 %v1819
    %vm1826 = vmor %vm1824, %vm1825
    %v1827 = vsel %vm1826, %v1819, %v1823
    %v1828 = vand.u32 2147483647, %v1660
    %vm1829 = vcmp.eq.f32.partialorder %v1828, 8.507059e+37
    %v1830 = vand.u32 %v1660, 2147483648
    %v1831 = vor.u32 1.1754944e-38, %v1830
    %v1832 = vsel %vm1829, %v1831, %v1827
    %v1833 = vrcp.pop %v1661
    %v1834 = vmul.f32 %v1661, %v1833
    %v1835 = vsub.f32 1.0, %v1834
    %v1836 = vmul.f32 %v1833, %v1835
    %v1837 = vadd.f32 %v1833, %v1836
    %vm1838 = vweird.f32 %v1661
    %vm1839 = vweird.f32 %v1833
    %vm1840 = vmor %vm1838, %vm1839
    %v1841 = vsel %vm1840, %v1833, %v1837
    %v1842 = vand.u32 2147483647, %v1661
    %vm1843 = vcmp.eq.f32.partialorder %v1842, 8.507059e+37
    %v1844 = vand.u32 %v1661, 2147483648
    %v1845 = vor.u32 1.1754944e-38, %v1844
    %v1846 = vsel %vm1843, %v1845, %v1841
    %v1847 = vrcp.pop %v1662
    %v1848 = vmul.f32 %v1662, %v1847
    %v1849 = vsub.f32 1.0, %v1848
    %v1850 = vmul.f32 %v1847, %v1849
    %v1851 = vadd.f32 %v1847, %v1850
    %vm1852 = vweird.f32 %v1662
    %vm1853 = vweird.f32 %v1847
    %vm1854 = vmor %vm1852, %vm1853
    %v1855 = vsel %vm1854, %v1847, %v1851
    %v1856 = vand.u32 2147483647, %v1662
    %vm1857 = vcmp.eq.f32.partialorder %v1856, 8.507059e+37
    %v1858 = vand.u32 %v1662, 2147483648
    %v1859 = vor.u32 1.1754944e-38, %v1858
    %v1860 = vsel %vm1857, %v1859, %v1855
    %v1861 = vrcp.pop %v1663
    %v1862 = vmul.f32 %v1663, %v1861
    %v1863 = vsub.f32 1.0, %v1862
    %v1864 = vmul.f32 %v1861, %v1863
    %v1865 = vadd.f32 %v1861, %v1864
    %vm1866 = vweird.f32 %v1663
    %vm1867 = vweird.f32 %v1861
    %vm1868 = vmor %vm1866, %vm1867
    %v1869 = vsel %vm1868, %v1861, %v1865
    %v1870 = vand.u32 2147483647, %v1663
    %vm1871 = vcmp.eq.f32.partialorder %v1870, 8.507059e+37
    %v1872 = vand.u32 %v1663, 2147483648
    %v1873 = vor.u32 1.1754944e-38, %v1872
    %v1874 = vsel %vm1871, %v1873, %v1869
    %v1875 = vrcp.pop %v1664
    %v1876 = vmul.f32 %v1664, %v1875
    %v1877 = vsub.f32 1.0, %v1876
    %v1878 = vmul.f32 %v1875, %v1877
    %v1879 = vadd.f32 %v1875, %v1878
    %vm1880 = vweird.f32 %v1664
    %vm1881 = vweird.f32 %v1875
    %vm1882 = vmor %vm1880, %vm1881
    %v1883 = vsel %vm1882, %v1875, %v1879
    %v1884 = vand.u32 2147483647, %v1664
    %vm1885 = vcmp.eq.f32.partialorder %v1884, 8.507059e+37
    %v1886 = vand.u32 %v1664, 2147483648
    %v1887 = vor.u32 1.1754944e-38, %v1886
    %v1888 = vsel %vm1885, %v1887, %v1883
    %v1889 = vsub.f32 1.0, %v1678
    %v1890 = vsub.f32 1.0, %v1692
    %v1891 = vsub.f32 1.0, %v1706
    %v1892 = vsub.f32 1.0, %v1720
    %v1893 = vsub.f32 1.0, %v1734
    %v1894 = vsub.f32 1.0, %v1748
    %v1895 = vsub.f32 1.0, %v1762
    %v1896 = vsub.f32 1.0, %v1776
    %v1897 = vsub.f32 1.0, %v1790
    %v1898 = vsub.f32 1.0, %v1804
    %v1899 = vsub.f32 1.0, %v1818
    %v1900 = vsub.f32 1.0, %v1832
    %v1901 = vsub.f32 1.0, %v1846
    %v1902 = vsub.f32 1.0, %v1860
    %v1903 = vsub.f32 1.0, %v1874
    %v1904 = vsub.f32 1.0, %v1888
    %1921 = vrot.lane.b32.xlu0 %v1554, 127
    %v1922 = vpop.permute.xlu0 %1921
    %1923 = vrot.lane.b32.xlu0 %v1557, 127
    %v1924 = vpop.permute.xlu0 %1923
    %1925 = vrot.lane.b32.xlu0 %v1560, 127
    %v1926 = vpop.permute.xlu0 %1925
    %1927 = vrot.lane.b32.xlu0 %v1563, 127
    %v1928 = vpop.permute.xlu0 %1927
    %1929 = vrot.lane.b32.xlu0 %v1566, 127
    %v1930 = vpop.permute.xlu0 %1929
    %1931 = vrot.lane.b32.xlu0 %v1569, 127
    %v1932 = vpop.permute.xlu0 %1931
    %1933 = vrot.lane.b32.xlu0 %v1572, 127
    %v1934 = vpop.permute.xlu0 %1933
    %1935 = vrot.lane.b32.xlu0 %v1575, 127
    %v1936 = vpop.permute.xlu0 %1935
    %1937 = vrot.lane.b32.xlu0 %v1578, 127
    %v1938 = vpop.permute.xlu0 %1937
    %1939 = vrot.lane.b32.xlu0 %v1581, 127
    %v1940 = vpop.permute.xlu0 %1939
    %1941 = vrot.lane.b32.xlu0 %v1584, 127
    %v1942 = vpop.permute.xlu0 %1941
    %1943 = vrot.lane.b32.xlu0 %v1587, 127
    %v1944 = vpop.permute.xlu0 %1943
    %1945 = vrot.lane.b32.xlu0 %v1590, 127
    %v1946 = vpop.permute.xlu0 %1945
    %1947 = vrot.lane.b32.xlu0 %v1593, 127
    %v1948 = vpop.permute.xlu0 %1947
    %1949 = vrot.lane.b32.xlu0 %v1596, 127
    %v1950 = vpop.permute.xlu0 %1949
    %1951 = vrot.lane.b32.xlu0 %v1599, 127
    %v1952 = vpop.permute.xlu0 %1951
    %v1969 = vmul.f32 %v1889, %v1922
    %v1970 = vmul.f32 %v1890, %v1924
    %v1971 = vmul.f32 %v1891, %v1926
    %v1972 = vmul.f32 %v1892, %v1928
    %v1973 = vmul.f32 %v1893, %v1930
    %v1974 = vmul.f32 %v1894, %v1932
    %v1975 = vmul.f32 %v1895, %v1934
    %v1976 = vmul.f32 %v1896, %v1936
    %v1977 = vmul.f32 %v1897, %v1938
    %v1978 = vmul.f32 %v1898, %v1940
    %v1979 = vmul.f32 %v1899, %v1942
    %v1980 = vmul.f32 %v1900, %v1944
    %v1981 = vmul.f32 %v1901, %v1946
    %v1982 = vmul.f32 %v1902, %v1948
    %v1983 = vmul.f32 %v1903, %v1950
    %v1984 = vmul.f32 %v1904, %v1952
    %1985 = vrot.lane.b32.xlu0 %v1554, 126
    %v1986 = vpop.permute.xlu0 %1985
    %1987 = vrot.lane.b32.xlu0 %v1557, 126
    %v1988 = vpop.permute.xlu0 %1987
    %1989 = vrot.lane.b32.xlu0 %v1560, 126
    %v1990 = vpop.permute.xlu0 %1989
    %1991 = vrot.lane.b32.xlu0 %v1563, 126
    %v1992 = vpop.permute.xlu0 %1991
    %1993 = vrot.lane.b32.xlu0 %v1566, 126
    %v1994 = vpop.permute.xlu0 %1993
    %1995 = vrot.lane.b32.xlu0 %v1569, 126
    %v1996 = vpop.permute.xlu0 %1995
    %1997 = vrot.lane.b32.xlu0 %v1572, 126
    %v1998 = vpop.permute.xlu0 %1997
    %1999 = vrot.lane.b32.xlu0 %v1575, 126
    %v2000 = vpop.permute.xlu0 %1999
    %2001 = vrot.lane.b32.xlu0 %v1578, 126
    %v2002 = vpop.permute.xlu0 %2001
    %2003 = vrot.lane.b32.xlu0 %v1581, 126
    %v2004 = vpop.permute.xlu0 %2003
    %2005 = vrot.lane.b32.xlu0 %v1584, 126
    %v2006 = vpop.permute.xlu0 %2005
    %2007 = vrot.lane.b32.xlu0 %v1587, 126
    %v2008 = vpop.permute.xlu0 %2007
    %2009 = vrot.lane.b32.xlu0 %v1590, 126
    %v2010 = vpop.permute.xlu0 %2009
    %2011 = vrot.lane.b32.xlu0 %v1593, 126
    %v2012 = vpop.permute.xlu0 %2011
    %2013 = vrot.lane.b32.xlu0 %v1596, 126
    %v2014 = vpop.permute.xlu0 %2013
    %2015 = vrot.lane.b32.xlu0 %v1599, 126
    %v2016 = vpop.permute.xlu0 %2015
    %v2033 = vmul.f32 %v1678, %v1986
    %v2034 = vmul.f32 %v1692, %v1988
    %v2035 = vmul.f32 %v1706, %v1990
    %v2036 = vmul.f32 %v1720, %v1992
    %v2037 = vmul.f32 %v1734, %v1994
    %v2038 = vmul.f32 %v1748, %v1996
    %v2039 = vmul.f32 %v1762, %v1998
    %v2040 = vmul.f32 %v1776, %v2000
    %v2041 = vmul.f32 %v1790, %v2002
    %v2042 = vmul.f32 %v1804, %v2004
    %v2043 = vmul.f32 %v1818, %v2006
    %v2044 = vmul.f32 %v1832, %v2008
    %v2045 = vmul.f32 %v1846, %v2010
    %v2046 = vmul.f32 %v1860, %v2012
    %v2047 = vmul.f32 %v1874, %v2014
    %v2048 = vmul.f32 %v1888, %v2016
    %v2049 = vadd.f32 %v1969, %v2033
    %v2050 = vadd.f32 %v1970, %v2034
    %v2051 = vadd.f32 %v1971, %v2035
    %v2052 = vadd.f32 %v1972, %v2036
    %v2053 = vadd.f32 %v1973, %v2037
    %v2054 = vadd.f32 %v1974, %v2038
    %v2055 = vadd.f32 %v1975, %v2039
    %v2056 = vadd.f32 %v1976, %v2040
    %v2057 = vadd.f32 %v1977, %v2041
    %v2058 = vadd.f32 %v1978, %v2042
    %v2059 = vadd.f32 %v1979, %v2043
    %v2060 = vadd.f32 %v1980, %v2044
    %v2061 = vadd.f32 %v1981, %v2045
    %v2062 = vadd.f32 %v1982, %v2046
    %v2063 = vadd.f32 %v1983, %v2047
    %v2064 = vadd.f32 %v1984, %v2048
    %vm2065 = vcmask 523264
    %2066 = vst.msk [vmem:[#allocation2] sm:$0xff] %vm2065, %v1192
    %2067 = vst.msk [vmem:[#allocation2 + $0x8] sm:$0xff] %vm2065, %v1195
    %2068 = vst.msk [vmem:[#allocation2 + $0x10] sm:$0xff] %vm2065, %v1198
    %2069 = vst.msk [vmem:[#allocation2 + $0x18] sm:$0xff] %vm2065, %v1201
    %2070 = vst.msk [vmem:[#allocation2 + $0x20] sm:$0xff] %vm2065, %v1204
    %2071 = vst.msk [vmem:[#allocation2 + $0x28] sm:$0xff] %vm2065, %v1207
    %2072 = vst.msk [vmem:[#allocation2 + $0x30] sm:$0xff] %vm2065, %v1210
    %2073 = vst.msk [vmem:[#allocation2 + $0x38] sm:$0xff] %vm2065, %v1213
    %2074 = vst.msk [vmem:[#allocation2 + $0x40] sm:$0xff] %vm2065, %v1216
    %2075 = vst.msk [vmem:[#allocation2 + $0x48] sm:$0xff] %vm2065, %v1219
    %2076 = vst.msk [vmem:[#allocation2 + $0x50] sm:$0xff] %vm2065, %v1222
    %2077 = vst.msk [vmem:[#allocation2 + $0x58] sm:$0xff] %vm2065, %v1225
    %2078 = vst.msk [vmem:[#allocation2 + $0x60] sm:$0xff] %vm2065, %v1228
    %2079 = vst.msk [vmem:[#allocation2 + $0x68] sm:$0xff] %vm2065, %v1231
    %2080 = vst.msk [vmem:[#allocation2 + $0x70] sm:$0xff] %vm2065, %v1234
    %2081 = vst.msk [vmem:[#allocation2 + $0x78] sm:$0xff] %vm2065, %v1237
    %2082 = vrot.lane.b32.xlu0 %v1554, 64
    %v2083 = vpop.permute.xlu0 %2082
    %2084 = vrot.lane.b32.xlu0 %v1557, 64
    %v2085 = vpop.permute.xlu0 %2084
    %2086 = vrot.lane.b32.xlu0 %v1560, 64
    %v2087 = vpop.permute.xlu0 %2086
    %2088 = vrot.lane.b32.xlu0 %v1563, 64
    %v2089 = vpop.permute.xlu0 %2088
    %2090 = vrot.lane.b32.xlu0 %v1566, 64
    %v2091 = vpop.permute.xlu0 %2090
    %2092 = vrot.lane.b32.xlu0 %v1569, 64
    %v2093 = vpop.permute.xlu0 %2092
    %2094 = vrot.lane.b32.xlu0 %v1572, 64
    %v2095 = vpop.permute.xlu0 %2094
    %2096 = vrot.lane.b32.xlu0 %v1575, 64
    %v2097 = vpop.permute.xlu0 %2096
    %2098 = vrot.lane.b32.xlu0 %v1578, 64
    %v2099 = vpop.permute.xlu0 %2098
    %2100 = vrot.lane.b32.xlu0 %v1581, 64
    %v2101 = vpop.permute.xlu0 %2100
    %2102 = vrot.lane.b32.xlu0 %v1584, 64
    %v2103 = vpop.permute.xlu0 %2102
    %2104 = vrot.lane.b32.xlu0 %v1587, 64
    %v2105 = vpop.permute.xlu0 %2104
    %2106 = vrot.lane.b32.xlu0 %v1590, 64
    %v2107 = vpop.permute.xlu0 %2106
    %2108 = vrot.lane.b32.xlu0 %v1593, 64
    %v2109 = vpop.permute.xlu0 %2108
    %2110 = vrot.lane.b32.xlu0 %v1596, 64
    %v2111 = vpop.permute.xlu0 %2110
    %2112 = vrot.lane.b32.xlu0 %v1599, 64
    %v2113 = vpop.permute.xlu0 %2112
    %vm2130 = vcmask 785920
    %2131 = vst.msk [vmem:[#allocation2] sm:$0xff] %vm2130, %v2083
    %2132 = vst.msk [vmem:[#allocation2 + $0x8] sm:$0xff] %vm2130, %v2085
    %2133 = vst.msk [vmem:[#allocation2 + $0x10] sm:$0xff] %vm2130, %v2087
    %2134 = vst.msk [vmem:[#allocation2 + $0x18] sm:$0xff] %vm2130, %v2089
    %2135 = vst.msk [vmem:[#allocation2 + $0x20] sm:$0xff] %vm2130, %v2091
    %2136 = vst.msk [vmem:[#allocation2 + $0x28] sm:$0xff] %vm2130, %v2093
    %2137 = vst.msk [vmem:[#allocation2 + $0x30] sm:$0xff] %vm2130, %v2095
    %2138 = vst.msk [vmem:[#allocation2 + $0x38] sm:$0xff] %vm2130, %v2097
    %2139 = vst.msk [vmem:[#allocation2 + $0x40] sm:$0xff] %vm2130, %v2099
    %2140 = vst.msk [vmem:[#allocation2 + $0x48] sm:$0xff] %vm2130, %v2101
    %2141 = vst.msk [vmem:[#allocation2 + $0x50] sm:$0xff] %vm2130, %v2103
    %2142 = vst.msk [vmem:[#allocation2 + $0x58] sm:$0xff] %vm2130, %v2105
    %2143 = vst.msk [vmem:[#allocation2 + $0x60] sm:$0xff] %vm2130, %v2107
    %2144 = vst.msk [vmem:[#allocation2 + $0x68] sm:$0xff] %vm2130, %v2109
    %2145 = vst.msk [vmem:[#allocation2 + $0x70] sm:$0xff] %vm2130, %v2111
    %2146 = vst.msk [vmem:[#allocation2 + $0x78] sm:$0xff] %vm2130, %v2113
    %v2147 = vlaneseq
    %v2148 = vand.u32 %v2147, 127
    %vm2149 = vcmp.eq.s32.totalorder %v2148, 0
    %v2150 = vsel %vm2149, 1, 0
    %vm2151 = vcmp.eq.s32.totalorder %v2150, 1
    %v2152 = vsel %vm2151, %v616, 0.0
    %v2153 = vsel %vm2151, %v621, 0.0
    %v2154 = vsel %vm2151, %v626, 0.0
    %v2155 = vsel %vm2151, %v631, 0.0
    %v2156 = vsel %vm2151, %v636, 0.0
    %v2157 = vsel %vm2151, %v641, 0.0
    %v2158 = vsel %vm2151, %v646, 0.0
    %v2159 = vsel %vm2151, %v651, 0.0
    %v2160 = vsel %vm2151, %v656, 0.0
    %v2161 = vsel %vm2151, %v661, 0.0
    %v2162 = vsel %vm2151, %v666, 0.0
    %v2163 = vsel %vm2151, %v671, 0.0
    %v2164 = vsel %vm2151, %v676, 0.0
    %v2165 = vsel %vm2151, %v681, 0.0
    %v2166 = vsel %vm2151, %v686, 0.0
    %v2167 = vsel %vm2151, %v691, 0.0
    %vm2168 = vcmp.eq.s32.totalorder %v2148, 1
    %v2169 = vsel %vm2168, 1, 0
    %vm2170 = vcmp.eq.s32.totalorder %v2169, 1
    %v2171 = vsel %vm2170, %v969, 0.0
    %v2172 = vsel %vm2170, %v974, 0.0
    %v2173 = vsel %vm2170, %v979, 0.0
    %v2174 = vsel %vm2170, %v984, 0.0
    %v2175 = vsel %vm2170, %v989, 0.0
    %v2176 = vsel %vm2170, %v994, 0.0
    %v2177 = vsel %vm2170, %v999, 0.0
    %v2178 = vsel %vm2170, %v1004, 0.0
    %v2179 = vsel %vm2170, %v1009, 0.0
    %v2180 = vsel %vm2170, %v1014, 0.0
    %v2181 = vsel %vm2170, %v1019, 0.0
    %v2182 = vsel %vm2170, %v1024, 0.0
    %v2183 = vsel %vm2170, %v1029, 0.0
    %v2184 = vsel %vm2170, %v1034, 0.0
    %v2185 = vsel %vm2170, %v1039, 0.0
    %v2186 = vsel %vm2170, %v1044, 0.0
    %v2187 = vadd.f32 %v2152, %v2171
    %v2188 = vadd.f32 %v2153, %v2172
    %v2189 = vadd.f32 %v2154, %v2173
    %v2190 = vadd.f32 %v2155, %v2174
    %v2191 = vadd.f32 %v2156, %v2175
    %v2192 = vadd.f32 %v2157, %v2176
    %v2193 = vadd.f32 %v2158, %v2177
    %v2194 = vadd.f32 %v2159, %v2178
    %v2195 = vadd.f32 %v2160, %v2179
    %v2196 = vadd.f32 %v2161, %v2180
    %v2197 = vadd.f32 %v2162, %v2181
    %v2198 = vadd.f32 %v2163, %v2182
    %v2199 = vadd.f32 %v2164, %v2183
    %v2200 = vadd.f32 %v2165, %v2184
    %v2201 = vadd.f32 %v2166, %v2185
    %v2202 = vadd.f32 %v2167, %v2186
    %vm2203 = vcmp.eq.s32.totalorder %v2148, 2
    %v2204 = vsel %vm2203, 1, 0
    %vm2205 = vcmp.eq.s32.totalorder %v2204, 1
    %2207 = vset.pattern.permute.xlu0 32
    %2208 = vperm.xlu0 %2207, %v1678
    %v2209 = vpop.permute.xlu0 %2208
    %2212 = vset.pattern.permute.xlu0 32
    %2213 = vperm.xlu0 %2212, %v1692
    %v2214 = vpop.permute.xlu0 %2213
    %2217 = vset.pattern.permute.xlu0 32
    %2218 = vperm.xlu0 %2217, %v1706
    %v2219 = vpop.permute.xlu0 %2218
    %2222 = vset.pattern.permute.xlu0 32
    %2223 = vperm.xlu0 %2222, %v1720
    %v2224 = vpop.permute.xlu0 %2223
    %2227 = vset.pattern.permute.xlu0 32
    %2228 = vperm.xlu0 %2227, %v1734
    %v2229 = vpop.permute.xlu0 %2228
    %2232 = vset.pattern.permute.xlu0 32
    %2233 = vperm.xlu0 %2232, %v1748
    %v2234 = vpop.permute.xlu0 %2233
    %2237 = vset.pattern.permute.xlu0 32
    %2238 = vperm.xlu0 %2237, %v1762
    %v2239 = vpop.permute.xlu0 %2238
    %2242 = vset.pattern.permute.xlu0 32
    %2243 = vperm.xlu0 %2242, %v1776
    %v2244 = vpop.permute.xlu0 %2243
    %2247 = vset.pattern.permute.xlu0 32
    %2248 = vperm.xlu0 %2247, %v1790
    %v2249 = vpop.permute.xlu0 %2248
    %2252 = vset.pattern.permute.xlu0 32
    %2253 = vperm.xlu0 %2252, %v1804
    %v2254 = vpop.permute.xlu0 %2253
    %2257 = vset.pattern.permute.xlu0 32
    %2258 = vperm.xlu0 %2257, %v1818
    %v2259 = vpop.permute.xlu0 %2258
    %2262 = vset.pattern.permute.xlu0 32
    %2263 = vperm.xlu0 %2262, %v1832
    %v2264 = vpop.permute.xlu0 %2263
    %2267 = vset.pattern.permute.xlu0 32
    %2268 = vperm.xlu0 %2267, %v1846
    %v2269 = vpop.permute.xlu0 %2268
    %2272 = vset.pattern.permute.xlu0 32
    %2273 = vperm.xlu0 %2272, %v1860
    %v2274 = vpop.permute.xlu0 %2273
    %2277 = vset.pattern.permute.xlu0 32
    %2278 = vperm.xlu0 %2277, %v1874
    %v2279 = vpop.permute.xlu0 %2278
    %2282 = vset.pattern.permute.xlu0 32
    %2283 = vperm.xlu0 %2282, %v1888
    %v2284 = vpop.permute.xlu0 %2283
    %v2286 = vsel %vm2205, %v2209, 0.0
    %v2287 = vsel %vm2205, %v2214, 0.0
    %v2288 = vsel %vm2205, %v2219, 0.0
    %v2289 = vsel %vm2205, %v2224, 0.0
    %v2290 = vsel %vm2205, %v2229, 0.0
    %v2291 = vsel %vm2205, %v2234, 0.0
    %v2292 = vsel %vm2205, %v2239, 0.0
    %v2293 = vsel %vm2205, %v2244, 0.0
    %v2294 = vsel %vm2205, %v2249, 0.0
    %v2295 = vsel %vm2205, %v2254, 0.0
    %v2296 = vsel %vm2205, %v2259, 0.0
    %v2297 = vsel %vm2205, %v2264, 0.0
    %v2298 = vsel %vm2205, %v2269, 0.0
    %v2299 = vsel %vm2205, %v2274, 0.0
    %v2300 = vsel %vm2205, %v2279, 0.0
    %v2301 = vsel %vm2205, %v2284, 0.0
    %v2302 = vadd.f32 %v2187, %v2286
    %v2303 = vadd.f32 %v2188, %v2287
    %v2304 = vadd.f32 %v2189, %v2288
    %v2305 = vadd.f32 %v2190, %v2289
    %v2306 = vadd.f32 %v2191, %v2290
    %v2307 = vadd.f32 %v2192, %v2291
    %v2308 = vadd.f32 %v2193, %v2292
    %v2309 = vadd.f32 %v2194, %v2293
    %v2310 = vadd.f32 %v2195, %v2294
    %v2311 = vadd.f32 %v2196, %v2295
    %v2312 = vadd.f32 %v2197, %v2296
    %v2313 = vadd.f32 %v2198, %v2297
    %v2314 = vadd.f32 %v2199, %v2298
    %v2315 = vadd.f32 %v2200, %v2299
    %v2316 = vadd.f32 %v2201, %v2300
    %v2317 = vadd.f32 %v2202, %v2301
    %vm2318 = vcmp.eq.s32.totalorder %v2148, 3
    %v2319 = vsel %vm2318, 1, 0
    %vm2320 = vcmp.eq.s32.totalorder %v2319, 1
    %2322 = vset.pattern.permute.xlu0 32
    %2323 = vperm.xlu0 %2322, %v2049
    %v2324 = vpop.permute.xlu0 %2323
    %2327 = vset.pattern.permute.xlu0 32
    %2328 = vperm.xlu0 %2327, %v2050
    %v2329 = vpop.permute.xlu0 %2328
    %2332 = vset.pattern.permute.xlu0 32
    %2333 = vperm.xlu0 %2332, %v2051
    %v2334 = vpop.permute.xlu0 %2333
    %2337 = vset.pattern.permute.xlu0 32
    %2338 = vperm.xlu0 %2337, %v2052
    %v2339 = vpop.permute.xlu0 %2338
    %2342 = vset.pattern.permute.xlu0 32
    %2343 = vperm.xlu0 %2342, %v2053
    %v2344 = vpop.permute.xlu0 %2343
    %2347 = vset.pattern.permute.xlu0 32
    %2348 = vperm.xlu0 %2347, %v2054
    %v2349 = vpop.permute.xlu0 %2348
    %2352 = vset.pattern.permute.xlu0 32
    %2353 = vperm.xlu0 %2352, %v2055
    %v2354 = vpop.permute.xlu0 %2353
    %2357 = vset.pattern.permute.xlu0 32
    %2358 = vperm.xlu0 %2357, %v2056
    %v2359 = vpop.permute.xlu0 %2358
    %2362 = vset.pattern.permute.xlu0 32
    %2363 = vperm.xlu0 %2362, %v2057
    %v2364 = vpop.permute.xlu0 %2363
    %2367 = vset.pattern.permute.xlu0 32
    %2368 = vperm.xlu0 %2367, %v2058
    %v2369 = vpop.permute.xlu0 %2368
    %2372 = vset.pattern.permute.xlu0 32
    %2373 = vperm.xlu0 %2372, %v2059
    %v2374 = vpop.permute.xlu0 %2373
    %2377 = vset.pattern.permute.xlu0 32
    %2378 = vperm.xlu0 %2377, %v2060
    %v2379 = vpop.permute.xlu0 %2378
    %2382 = vset.pattern.permute.xlu0 32
    %2383 = vperm.xlu0 %2382, %v2061
    %v2384 = vpop.permute.xlu0 %2383
    %2387 = vset.pattern.permute.xlu0 32
    %2388 = vperm.xlu0 %2387, %v2062
    %v2389 = vpop.permute.xlu0 %2388
    %2392 = vset.pattern.permute.xlu0 32
    %2393 = vperm.xlu0 %2392, %v2063
    %v2394 = vpop.permute.xlu0 %2393
    %2397 = vset.pattern.permute.xlu0 32
    %2398 = vperm.xlu0 %2397, %v2064
    %v2399 = vpop.permute.xlu0 %2398
    %v2401 = vsel %vm2320, %v2324, 0.0
    %v2402 = vsel %vm2320, %v2329, 0.0
    %v2403 = vsel %vm2320, %v2334, 0.0
    %v2404 = vsel %vm2320, %v2339, 0.0
    %v2405 = vsel %vm2320, %v2344, 0.0
    %v2406 = vsel %vm2320, %v2349, 0.0
    %v2407 = vsel %vm2320, %v2354, 0.0
    %v2408 = vsel %vm2320, %v2359, 0.0
    %v2409 = vsel %vm2320, %v2364, 0.0
    %v2410 = vsel %vm2320, %v2369, 0.0
    %v2411 = vsel %vm2320, %v2374, 0.0
    %v2412 = vsel %vm2320, %v2379, 0.0
    %v2413 = vsel %vm2320, %v2384, 0.0
    %v2414 = vsel %vm2320, %v2389, 0.0
    %v2415 = vsel %vm2320, %v2394, 0.0
    %v2416 = vsel %vm2320, %v2399, 0.0
    %v2417 = vadd.f32 %v2302, %v2401
    %v2418 = vadd.f32 %v2303, %v2402
    %v2419 = vadd.f32 %v2304, %v2403
    %v2420 = vadd.f32 %v2305, %v2404
    %v2421 = vadd.f32 %v2306, %v2405
    %v2422 = vadd.f32 %v2307, %v2406
    %v2423 = vadd.f32 %v2308, %v2407
    %v2424 = vadd.f32 %v2309, %v2408
    %v2425 = vadd.f32 %v2310, %v2409
    %v2426 = vadd.f32 %v2311, %v2410
    %v2427 = vadd.f32 %v2312, %v2411
    %v2428 = vadd.f32 %v2313, %v2412
    %v2429 = vadd.f32 %v2314, %v2413
    %v2430 = vadd.f32 %v2315, %v2414
    %v2431 = vadd.f32 %v2316, %v2415
    %v2432 = vadd.f32 %v2317, %v2416
    %vm2433 = vcmp.eq.s32.totalorder %v2148, 4
    %v2434 = vsel %vm2433, 1, 0
    %vm2435 = vcmp.eq.s32.totalorder %v2434, 1
    %2436 = vset.pattern.permute.xlu0 33
    %2437 = vperm.xlu0 %2436, %v1554
    %v2438 = vpop.permute.xlu0 %2437
    %2440 = vset.pattern.permute.xlu0 33
    %2441 = vperm.xlu0 %2440, %v1557
    %v2442 = vpop.permute.xlu0 %2441
    %2444 = vset.pattern.permute.xlu0 33
    %2445 = vperm.xlu0 %2444, %v1560
    %v2446 = vpop.permute.xlu0 %2445
    %2448 = vset.pattern.permute.xlu0 33
    %2449 = vperm.xlu0 %2448, %v1563
    %v2450 = vpop.permute.xlu0 %2449
    %2452 = vset.pattern.permute.xlu0 33
    %2453 = vperm.xlu0 %2452, %v1566
    %v2454 = vpop.permute.xlu0 %2453
    %2456 = vset.pattern.permute.xlu0 33
    %2457 = vperm.xlu0 %2456, %v1569
    %v2458 = vpop.permute.xlu0 %2457
    %2460 = vset.pattern.permute.xlu0 33
    %2461 = vperm.xlu0 %2460, %v1572
    %v2462 = vpop.permute.xlu0 %2461
    %2464 = vset.pattern.permute.xlu0 33
    %2465 = vperm.xlu0 %2464, %v1575
    %v2466 = vpop.permute.xlu0 %2465
    %2468 = vset.pattern.permute.xlu0 33
    %2469 = vperm.xlu0 %2468, %v1578
    %v2470 = vpop.permute.xlu0 %2469
    %2472 = vset.pattern.permute.xlu0 33
    %2473 = vperm.xlu0 %2472, %v1581
    %v2474 = vpop.permute.xlu0 %2473
    %2476 = vset.pattern.permute.xlu0 33
    %2477 = vperm.xlu0 %2476, %v1584
    %v2478 = vpop.permute.xlu0 %2477
    %2480 = vset.pattern.permute.xlu0 33
    %2481 = vperm.xlu0 %2480, %v1587
    %v2482 = vpop.permute.xlu0 %2481
    %2484 = vset.pattern.permute.xlu0 33
    %2485 = vperm.xlu0 %2484, %v1590
    %v2486 = vpop.permute.xlu0 %2485
    %2488 = vset.pattern.permute.xlu0 33
    %2489 = vperm.xlu0 %2488, %v1593
    %v2490 = vpop.permute.xlu0 %2489
    %2492 = vset.pattern.permute.xlu0 33
    %2493 = vperm.xlu0 %2492, %v1596
    %v2494 = vpop.permute.xlu0 %2493
    %2496 = vset.pattern.permute.xlu0 33
    %2497 = vperm.xlu0 %2496, %v1599
    %v2498 = vpop.permute.xlu0 %2497
    %v2500 = vsel %vm2435, %v2438, 0.0
    %v2501 = vsel %vm2435, %v2442, 0.0
    %v2502 = vsel %vm2435, %v2446, 0.0
    %v2503 = vsel %vm2435, %v2450, 0.0
    %v2504 = vsel %vm2435, %v2454, 0.0
    %v2505 = vsel %vm2435, %v2458, 0.0
    %v2506 = vsel %vm2435, %v2462, 0.0
    %v2507 = vsel %vm2435, %v2466, 0.0
    %v2508 = vsel %vm2435, %v2470, 0.0
    %v2509 = vsel %vm2435, %v2474, 0.0
    %v2510 = vsel %vm2435, %v2478, 0.0
    %v2511 = vsel %vm2435, %v2482, 0.0
    %v2512 = vsel %vm2435, %v2486, 0.0
    %v2513 = vsel %vm2435, %v2490, 0.0
    %v2514 = vsel %vm2435, %v2494, 0.0
    %v2515 = vsel %vm2435, %v2498, 0.0
    %v2516 = vadd.f32 %v2417, %v2500
    %v2517 = vadd.f32 %v2418, %v2501
    %v2518 = vadd.f32 %v2419, %v2502
    %v2519 = vadd.f32 %v2420, %v2503
    %v2520 = vadd.f32 %v2421, %v2504
    %v2521 = vadd.f32 %v2422, %v2505
    %v2522 = vadd.f32 %v2423, %v2506
    %v2523 = vadd.f32 %v2424, %v2507
    %v2524 = vadd.f32 %v2425, %v2508
    %v2525 = vadd.f32 %v2426, %v2509
    %v2526 = vadd.f32 %v2427, %v2510
    %v2527 = vadd.f32 %v2428, %v2511
    %v2528 = vadd.f32 %v2429, %v2512
    %v2529 = vadd.f32 %v2430, %v2513
    %v2530 = vadd.f32 %v2431, %v2514
    %v2531 = vadd.f32 %v2432, %v2515
    %vm2532 = vcmp.eq.s32.totalorder %v2148, 5
    %v2533 = vsel %vm2532, 1, 0
    %vm2534 = vcmp.eq.s32.totalorder %v2533, 1
    %2535 = vset.pattern.permute.xlu0 34
    %2536 = vperm.xlu0 %2535, %v1554
    %v2537 = vpop.permute.xlu0 %2536
    %2539 = vset.pattern.permute.xlu0 34
    %2540 = vperm.xlu0 %2539, %v1557
    %v2541 = vpop.permute.xlu0 %2540
    %2543 = vset.pattern.permute.xlu0 34
    %2544 = vperm.xlu0 %2543, %v1560
    %v2545 = vpop.permute.xlu0 %2544
    %2547 = vset.pattern.permute.xlu0 34
    %2548 = vperm.xlu0 %2547, %v1563
    %v2549 = vpop.permute.xlu0 %2548
    %2551 = vset.pattern.permute.xlu0 34
    %2552 = vperm.xlu0 %2551, %v1566
    %v2553 = vpop.permute.xlu0 %2552
    %2555 = vset.pattern.permute.xlu0 34
    %2556 = vperm.xlu0 %2555, %v1569
    %v2557 = vpop.permute.xlu0 %2556
    %2559 = vset.pattern.permute.xlu0 34
    %2560 = vperm.xlu0 %2559, %v1572
    %v2561 = vpop.permute.xlu0 %2560
    %2563 = vset.pattern.permute.xlu0 34
    %2564 = vperm.xlu0 %2563, %v1575
    %v2565 = vpop.permute.xlu0 %2564
    %2567 = vset.pattern.permute.xlu0 34
    %2568 = vperm.xlu0 %2567, %v1578
    %v2569 = vpop.permute.xlu0 %2568
    %2571 = vset.pattern.permute.xlu0 34
    %2572 = vperm.xlu0 %2571, %v1581
    %v2573 = vpop.permute.xlu0 %2572
    %2575 = vset.pattern.permute.xlu0 34
    %2576 = vperm.xlu0 %2575, %v1584
    %v2577 = vpop.permute.xlu0 %2576
    %2579 = vset.pattern.permute.xlu0 34
    %2580 = vperm.xlu0 %2579, %v1587
    %v2581 = vpop.permute.xlu0 %2580
    %2583 = vset.pattern.permute.xlu0 34
    %2584 = vperm.xlu0 %2583, %v1590
    %v2585 = vpop.permute.xlu0 %2584
    %2587 = vset.pattern.permute.xlu0 34
    %2588 = vperm.xlu0 %2587, %v1593
    %v2589 = vpop.permute.xlu0 %2588
    %2591 = vset.pattern.permute.xlu0 34
    %2592 = vperm.xlu0 %2591, %v1596
    %v2593 = vpop.permute.xlu0 %2592
    %2595 = vset.pattern.permute.xlu0 34
    %2596 = vperm.xlu0 %2595, %v1599
    %v2597 = vpop.permute.xlu0 %2596
    %v2599 = vsel %vm2534, %v2537, 0.0
    %v2600 = vsel %vm2534, %v2541, 0.0
    %v2601 = vsel %vm2534, %v2545, 0.0
    %v2602 = vsel %vm2534, %v2549, 0.0
    %v2603 = vsel %vm2534, %v2553, 0.0
    %v2604 = vsel %vm2534, %v2557, 0.0
    %v2605 = vsel %vm2534, %v2561, 0.0
    %v2606 = vsel %vm2534, %v2565, 0.0
    %v2607 = vsel %vm2534, %v2569, 0.0
    %v2608 = vsel %vm2534, %v2573, 0.0
    %v2609 = vsel %vm2534, %v2577, 0.0
    %v2610 = vsel %vm2534, %v2581, 0.0
    %v2611 = vsel %vm2534, %v2585, 0.0
    %v2612 = vsel %vm2534, %v2589, 0.0
    %v2613 = vsel %vm2534, %v2593, 0.0
    %v2614 = vsel %vm2534, %v2597, 0.0
    %v2615 = vadd.f32 %v2516, %v2599
    %v2616 = vadd.f32 %v2517, %v2600
    %v2617 = vadd.f32 %v2518, %v2601
    %v2618 = vadd.f32 %v2519, %v2602
    %v2619 = vadd.f32 %v2520, %v2603
    %v2620 = vadd.f32 %v2521, %v2604
    %v2621 = vadd.f32 %v2522, %v2605
    %v2622 = vadd.f32 %v2523, %v2606
    %v2623 = vadd.f32 %v2524, %v2607
    %v2624 = vadd.f32 %v2525, %v2608
    %v2625 = vadd.f32 %v2526, %v2609
    %v2626 = vadd.f32 %v2527, %v2610
    %v2627 = vadd.f32 %v2528, %v2611
    %v2628 = vadd.f32 %v2529, %v2612
    %v2629 = vadd.f32 %v2530, %v2613
    %v2630 = vadd.f32 %v2531, %v2614
    %2647 = vrot.lane.b32.xlu0 %v2615, 96
    %v2648 = vpop.permute.xlu0 %2647
    %2649 = vrot.lane.b32.xlu0 %v2616, 96
    %v2650 = vpop.permute.xlu0 %2649
    %2651 = vrot.lane.b32.xlu0 %v2617, 96
    %v2652 = vpop.permute.xlu0 %2651
    %2653 = vrot.lane.b32.xlu0 %v2618, 96
    %v2654 = vpop.permute.xlu0 %2653
    %2655 = vrot.lane.b32.xlu0 %v2619, 96
    %v2656 = vpop.permute.xlu0 %2655
    %2657 = vrot.lane.b32.xlu0 %v2620, 96
    %v2658 = vpop.permute.xlu0 %2657
    %2659 = vrot.lane.b32.xlu0 %v2621, 96
    %v2660 = vpop.permute.xlu0 %2659
    %2661 = vrot.lane.b32.xlu0 %v2622, 96
    %v2662 = vpop.permute.xlu0 %2661
    %2663 = vrot.lane.b32.xlu0 %v2623, 96
    %v2664 = vpop.permute.xlu0 %2663
    %2665 = vrot.lane.b32.xlu0 %v2624, 96
    %v2666 = vpop.permute.xlu0 %2665
    %2667 = vrot.lane.b32.xlu0 %v2625, 96
    %v2668 = vpop.permute.xlu0 %2667
    %2669 = vrot.lane.b32.xlu0 %v2626, 96
    %v2670 = vpop.permute.xlu0 %2669
    %2671 = vrot.lane.b32.xlu0 %v2627, 96
    %v2672 = vpop.permute.xlu0 %2671
    %2673 = vrot.lane.b32.xlu0 %v2628, 96
    %v2674 = vpop.permute.xlu0 %2673
    %2675 = vrot.lane.b32.xlu0 %v2629, 96
    %v2676 = vpop.permute.xlu0 %2675
    %2677 = vrot.lane.b32.xlu0 %v2630, 96
    %v2678 = vpop.permute.xlu0 %2677
    %vm2695 = vcmask 1048320
    %2696 = vst.msk [vmem:[#allocation2] sm:$0xff] %vm2695, %v2648
    %2697 = vst.msk [vmem:[#allocation2 + $0x8] sm:$0xff] %vm2695, %v2650
    %2698 = vst.msk [vmem:[#allocation2 + $0x10] sm:$0xff] %vm2695, %v2652
    %2699 = vst.msk [vmem:[#allocation2 + $0x18] sm:$0xff] %vm2695, %v2654
    %2700 = vst.msk [vmem:[#allocation2 + $0x20] sm:$0xff] %vm2695, %v2656
    %2701 = vst.msk [vmem:[#allocation2 + $0x28] sm:$0xff] %vm2695, %v2658
    %2702 = vst.msk [vmem:[#allocation2 + $0x30] sm:$0xff] %vm2695, %v2660
    %2703 = vst.msk [vmem:[#allocation2 + $0x38] sm:$0xff] %vm2695, %v2662
    %2704 = vst.msk [vmem:[#allocation2 + $0x40] sm:$0xff] %vm2695, %v2664
    %2705 = vst.msk [vmem:[#allocation2 + $0x48] sm:$0xff] %vm2695, %v2666
    %2706 = vst.msk [vmem:[#allocation2 + $0x50] sm:$0xff] %vm2695, %v2668
    %2707 = vst.msk [vmem:[#allocation2 + $0x58] sm:$0xff] %vm2695, %v2670
    %2708 = vst.msk [vmem:[#allocation2 + $0x60] sm:$0xff] %vm2695, %v2672
    %2709 = vst.msk [vmem:[#allocation2 + $0x68] sm:$0xff] %vm2695, %v2674
    %2710 = vst.msk [vmem:[#allocation2 + $0x70] sm:$0xff] %vm2695, %v2676
    %2711 = vst.msk [vmem:[#allocation2 + $0x78] sm:$0xff] %vm2695, %v2678
    // Predicated region
    $region18: #{tpu_custom_call.1} parent=1 // pred_check
      _
    $region19: #{tpu_custom_call.1} parent=1 // pred_check_branch
      %2713 = sbr.rel (0) target = $region21
    $region20: #{tpu_custom_call.1} parent=1 // pred_region
      %2715 = vsyncadd [#allocation3], 0
      %s2716 = sshll.u32 [#allocation2], 4
      %s2717 = int_to_ptr.vmem [resolvable:$true] %s2716
      %s2718 = sshll.u32 %s4, 4
      %s2719 = int_to_ptr.hbm [resolvable:$true] %s2718
      %2724 = dma.vmem_to_hbm [thread:$0]  %s2717, 2048, %s2719, [#allocation3], 128, 128, 8
    $region21: #{tpu_custom_call.1} parent=1 // pred_fallthru
      _
    // Predicated region
    $region22: #{tpu_custom_call.1} parent=1 // pred_check
      _
    $region23: #{tpu_custom_call.1} parent=1 // pred_check_branch
      %2726 = sbr.rel (0) target = $region25
    $region24: #{tpu_custom_call.1} parent=1 // pred_region
      %2728 = dma.done [#allocation3], 2048
    $region25: #{tpu_custom_call.1} parent=1 // pred_fallthru
      _
    %2729 = vsyncpa [#allocation3], 1

</llo_original>
